<compile_context>
chip_gen: v7x
topology: tpu7x:2x2x1
jax: 0.10.0
libtpu: 0.0.40
codegen_flags: <defaults>
</compile_context>

<pallas_src>
import functools

import jax
import jax.numpy as jnp
import numpy as np
from jax.experimental import pallas as pl
from jax.experimental.pallas import tpu as pltpu


def _resblock_kernel(mask_ref, x_ref, w1_ref, b1_ref, w2_ref, b2_ref, o_ref,
                     pad_ref, col_ref, *, H, W, IMG):
    """One group of IMG images per grid step.

    mask_ref: (1, Mt)      f32   1.0 on valid lanes, 0.0 on junk cols/rows
    x_ref   : (1, C, Mt)   f32   identity / conv1 input on the tall extended grid
    w*_ref  : (C, 9*C)     bf16  weight slab, [co, (ky*3+kx)*C + ci]
    b*_ref  : (C, 1)       f32   bias
    o_ref   : (1, C, Mt)   f32   output on the tall extended grid
    pad_ref : (C, P)       bf16  zero-padded tall image, P = Mt + 2*(W+2) + 2
    col_ref : (9*C, Mt)    bf16  im2col slab
    """
    C = x_ref.shape[1]
    Wp = W + 2
    Mt = IMG * (H + 1) * Wp          # tall extended output grid (lanes)
    border = Wp + 1                  # lanes before/after the interior that must be 0

    # Zero only the two border strips; the interior [border, border+Mt) is fully
    # overwritten by the bulk stores below.  Done every step (2 small stores) so it
    # is safe under megacore grid splitting (scratch is per-core, uninitialized).
    zeros_strip = jnp.zeros((C, border), pad_ref.dtype)
    pad_ref[:, 0:border] = zeros_strip
    pad_ref[:, border + Mt:] = zeros_strip

    def conv(w_ref, b_ref):
        # 9 taps = 9 contiguous lane-range slices of pad_ref stacked along sublanes
        # at multiples of C -> one (C,9C)x(9C,Mt) bf16 MXU matmul, f32 accumulation.
        # Note: the furthest tap reads pad[:, 2*Wp+2 : 2*Wp+2+Mt] == pad[:, P-Mt : P].
        for t in range(9):
            off = (t // 3) * Wp + (t % 3)
            col_ref[t * C:(t + 1) * C, :] = pad_ref[:, off:off + Mt]
        return jnp.dot(w_ref[...], col_ref[...],
                       preferred_element_type=jnp.float32) + b_ref[...]

    x = x_ref[0]                                            # (C, Mt) f32, identity

    # ---- conv1: x already has zeros on all junk lanes -> one bulk shifted store ----
    pad_ref[:, border:border + Mt] = x.astype(pad_ref.dtype)
    out1 = jnp.maximum(conv(w1_ref, b1_ref), 0.0)           # (C, Mt) f32

    # ---- conv2: zero junk lanes with one VPU multiply, then one bulk store ----
    pad_ref[:, border:border + Mt] = (out1 * mask_ref[...]).astype(pad_ref.dtype)
    out2 = conv(w2_ref, b2_ref)                             # (C, Mt) f32

    # ---- residual add + single lane-dense writeback (junk sliced off in wrapper) ----
    o_ref[0] = (x + out2).astype(o_ref.dtype)


def _choose_img(B, C, H, W, max_col_bytes=4 << 20):
    """Images per grid step: keep >= 2 grid steps when B allows (v7x: 2 TensorCores)
    and keep the bf16 im2col slab (9C x IMG*(H+1)*(W+2)) under max_col_bytes."""
    per_img = 9 * C * (H + 1) * (W + 2) * 2
    cap = max(1, max_col_bytes // per_img)
    target = max(1, min(cap, B // 2)) if B >= 2 else 1
    img = 1
    for d in range(1, int(target) + 1):
        if B % d == 0:
            img = d
    return img


@jax.jit
def residual_block_nobn(x_nchw, w1_oihw, b1, w2_oihw, b2):
    """PyTorch semantics: x + conv2(relu(conv1(x))), 3x3 / stride 1 / pad 1. NCHW in/out."""
    B, C, H, W = x_nchw.shape
    Wp = W + 2
    IMG = _choose_img(B, C, H, W)
    G = B // IMG
    Mt = IMG * (H + 1) * Wp
    P = Mt + 2 * Wp + 2      # sized exactly to the furthest tap read (off = 2*Wp+2)

    # TODO(synk): for large H*W / nf add a row-band (halo) grid axis so pad+col stay
    # within v7x's 64 MiB VMEM; whole-image(s)-per-step only holds for small frames.

    # Tall extended-grid input: pad each image with 2 zero cols + 1 zero row, stack
    # IMG images along the flattened row axis -> (G, C, Mt); pixel (i, y, x) sits at
    # lane (i*(H+1) + y)*Wp + x.  The zero lanes land exactly on the conv border cells.
    x_p = jnp.pad(x_nchw, ((0, 0), (0, 0), (0, 1), (0, 2)))          # (B, C, H+1, Wp)
    x_t = x_p.reshape(G, IMG, C, (H + 1) * Wp)
    x_t = jnp.transpose(x_t, (0, 2, 1, 3)).reshape(G, C, Mt)

    # Weight slab [co, (ky*3 + kx)*C + ci]; bf16 inputs for the MXU fast path.
    w1s = jnp.transpose(w1_oihw, (0, 2, 3, 1)).reshape(C, 9 * C).astype(jnp.bfloat16)
    w2s = jnp.transpose(w2_oihw, (0, 2, 3, 1)).reshape(C, 9 * C).astype(jnp.bfloat16)
    b1r = b1.reshape(C, 1).astype(jnp.float32)
    b2r = b2.reshape(C, 1).astype(jnp.float32)

    # 0/1 mask of valid (non-junk) lanes of the tall grid (for conv2 placement).
    lane = np.arange(Mt)
    valid = ((lane % Wp < W) & ((lane // Wp) % (H + 1) < H)).astype(np.float32)
    mask = jnp.asarray(valid.reshape(1, Mt))

    kernel = functools.partial(_resblock_kernel, H=H, W=W, IMG=IMG)

    out = pl.pallas_call(
        kernel,
        out_shape=jax.ShapeDtypeStruct((G, C, Mt), x_nchw.dtype),
        grid_spec=pltpu.PrefetchScalarGridSpec(
            num_scalar_prefetch=0,
            grid=(G,),
            in_specs=[
                pl.BlockSpec((1, Mt), lambda g: (0, 0)),          # junk-lane mask
                pl.BlockSpec((1, C, Mt), lambda g: (g, 0, 0)),    # x on tall grid
                pl.BlockSpec((C, 9 * C), lambda g: (0, 0)),       # w1 slab
                pl.BlockSpec((C, 1), lambda g: (0, 0)),           # b1
                pl.BlockSpec((C, 9 * C), lambda g: (0, 0)),       # w2 slab
                pl.BlockSpec((C, 1), lambda g: (0, 0)),           # b2
            ],
            out_specs=pl.BlockSpec((1, C, Mt), lambda g: (g, 0, 0)),
            scratch_shapes=[
                pltpu.VMEM((C, P), jnp.bfloat16),        # zero-padded tall image
                pltpu.VMEM((9 * C, Mt), jnp.bfloat16),   # im2col slab
            ],
        ),
        compiler_params=pltpu.CompilerParams(
            dimension_semantics=("parallel",),
            vmem_limit_bytes=32 * 1024 * 1024,
        ),
    )(mask, x_t, w1s, b1r, w2s, b2r)

    # Back to NCHW: (G, C, Mt) -> (B, C, H+1, Wp) -> drop the junk row / columns.
    out = out.reshape(G, C, IMG, H + 1, Wp)
    out = jnp.transpose(out, (0, 2, 1, 3, 4)).reshape(B, C, H + 1, Wp)
    return out[:, :, :H, :W]


def _reference(x_nchw, w1, b1, w2, b2):
    """Pure-JAX f32 reference mirroring F.conv2d(..., stride=1, padding=1)."""
    dn = jax.lax.conv_dimension_numbers(x_nchw.shape, w1.shape,
                                        ("NCHW", "OIHW", "NCHW"))
    c1 = jax.lax.conv_general_dilated(x_nchw, w1, (1, 1), ((1, 1), (1, 1)),
                                      dimension_numbers=dn)
    c1 = jnp.maximum(c1 + b1[None, :, None, None], 0.0)
    c2 = jax.lax.conv_general_dilated(c1, w2, (1, 1), ((1, 1), (1, 1)),
                                      dimension_numbers=dn)
    return x_nchw + c2 + b2[None, :, None, None]


if __name__ == "__main__":
    B, nf, H, W = 4, 32, 16, 16     # IMG=2 per step, grid=(2,) -> both v7x TCs busy

    key = jax.random.PRNGKey(0)
    kx, kw1, kw2 = jax.random.split(key, 3)

    # synthetic params matching initialize_weights([conv1, conv2], 0.1):
    # kaiming_normal_(fan_in) -> std = sqrt(2 / (Cin*3*3)), then *0.1; bias = 0
    fan_in = nf * 3 * 3
    std = float(np.sqrt(2.0 / fan_in)) * 0.1
    w1 = jax.random.normal(kw1, (nf, nf, 3, 3), jnp.float32) * std   # OIHW
    w2 = jax.random.normal(kw2, (nf, nf, 3, 3), jnp.float32) * std   # OIHW
    b1 = jnp.zeros((nf,), jnp.float32)
    b2 = jnp.zeros((nf,), jnp.float32)

    x = jax.random.normal(kx, (B, nf, H, W), jnp.float32)            # NCHW

    out = jax.block_until_ready(residual_block_nobn(x, w1, b1, w2, b2))

    ref = _reference(x, w1, b1, w2, b2)
    # bf16 MXU inputs (f32 accumulation / f32 residual), so tolerance is relaxed
    # vs. the pure-f32 PyTorch/JAX reference.
    np.testing.assert_allclose(np.asarray(out), np.asarray(ref),
                               rtol=2e-2, atol=2e-2)
    print("KERNEL_OK")
</pallas_src>

<mosaic_0001>
module attributes {stable_mosaic.version = 11 : i64} {
  func.func @_resblock_kernel(%arg0: i32, %arg1: memref<1x612xf32, #tpu.memory_space<vmem>>, %arg2: memref<1x32x612xf32, #tpu.memory_space<vmem>>, %arg3: memref<32x288xbf16, #tpu.memory_space<vmem>>, %arg4: memref<32x1xf32, #tpu.memory_space<vmem>>, %arg5: memref<32x288xbf16, #tpu.memory_space<vmem>>, %arg6: memref<32x1xf32, #tpu.memory_space<vmem>>, %arg7: memref<1x32x612xf32, #tpu.memory_space<vmem>>, %arg8: memref<32x650xbf16, #tpu.memory_space<vmem>>, %arg9: memref<288x612xbf16, #tpu.memory_space<vmem>>) attributes {dimension_semantics = [#tpu.dimension_semantics<parallel>], iteration_bounds = array<i64: 2>, scalar_prefetch = 0 : i64, scratch_operands = 2 : i64, tpu.core_type = #tpu.core_type<tc>, window_params = [{pipeline_mode = #tpu.pipeline_mode<synchronous>, transform_indices = @transform_0, window_bounds = array<i64: 1, 612>}, {transform_indices = @transform_1, window_bounds = array<i64: 1, 32, 612>}, {pipeline_mode = #tpu.pipeline_mode<synchronous>, transform_indices = @transform_2, window_bounds = array<i64: 32, 288>}, {pipeline_mode = #tpu.pipeline_mode<synchronous>, transform_indices = @transform_3, window_bounds = array<i64: 32, 1>}, {pipeline_mode = #tpu.pipeline_mode<synchronous>, transform_indices = @transform_4, window_bounds = array<i64: 32, 288>}, {pipeline_mode = #tpu.pipeline_mode<synchronous>, transform_indices = @transform_5, window_bounds = array<i64: 32, 1>}, {transform_indices = @transform_6, window_bounds = array<i64: 1, 32, 612>}]} {
    %cst = arith.constant 0.000000e+00 : bf16
    %0 = vector.broadcast %cst : bf16 to vector<32x19xbf16>
    %c0 = arith.constant 0 : index
    %c0_0 = arith.constant 0 : index
    %1 = vector.load %arg8[%c0, %c0_0] : memref<32x650xbf16, #tpu.memory_space<vmem>>, vector<32x19xbf16>
    tpu.vector_store %arg8[%c0, %c0_0], %0 {strides = array<i32>} : memref<32x650xbf16, #tpu.memory_space<vmem>>, vector<32x19xbf16>,
    %c0_1 = arith.constant 0 : index
    %c631 = arith.constant 631 : index
    %2 = vector.load %arg8[%c0_1, %c631] : memref<32x650xbf16, #tpu.memory_space<vmem>>, vector<32x19xbf16>
    tpu.vector_store %arg8[%c0_1, %c631], %0 {strides = array<i32>} : memref<32x650xbf16, #tpu.memory_space<vmem>>, vector<32x19xbf16>,
    %c0_2 = arith.constant 0 : index
    %c0_3 = arith.constant 0 : index
    %c0_4 = arith.constant 0 : index
    %3 = vector.load %arg2[%c0_2, %c0_3, %c0_4] : memref<1x32x612xf32, #tpu.memory_space<vmem>>, vector<1x32x612xf32>
    %4 = vector.shape_cast %3 : vector<1x32x612xf32> to vector<32x612xf32>
    %5 = arith.truncf %4 : vector<32x612xf32> to vector<32x612xbf16>
    %c0_5 = arith.constant 0 : index
    %c19 = arith.constant 19 : index
    %6 = vector.load %arg8[%c0_5, %c19] : memref<32x650xbf16, #tpu.memory_space<vmem>>, vector<32x612xbf16>
    tpu.vector_store %arg8[%c0_5, %c19], %5 {strides = array<i32>} : memref<32x650xbf16, #tpu.memory_space<vmem>>, vector<32x612xbf16>,
    %c0_6 = arith.constant 0 : index
    %c0_7 = arith.constant 0 : index
    %7 = vector.load %arg8[%c0_6, %c0_7] : memref<32x650xbf16, #tpu.memory_space<vmem>>, vector<32x612xbf16>
    %c0_8 = arith.constant 0 : index
    %c0_9 = arith.constant 0 : index
    %8 = vector.load %arg9[%c0_8, %c0_9] : memref<288x612xbf16, #tpu.memory_space<vmem>>, vector<32x612xbf16>
    tpu.vector_store %arg9[%c0_8, %c0_9], %7 {strides = array<i32>} : memref<288x612xbf16, #tpu.memory_space<vmem>>, vector<32x612xbf16>,
    %c0_10 = arith.constant 0 : index
    %c1 = arith.constant 1 : index
    %9 = vector.load %arg8[%c0_10, %c1] : memref<32x650xbf16, #tpu.memory_space<vmem>>, vector<32x612xbf16>
    %c32 = arith.constant 32 : index
    %c0_11 = arith.constant 0 : index
    %10 = vector.load %arg9[%c32, %c0_11] : memref<288x612xbf16, #tpu.memory_space<vmem>>, vector<32x612xbf16>
    tpu.vector_store %arg9[%c32, %c0_11], %9 {strides = array<i32>} : memref<288x612xbf16, #tpu.memory_space<vmem>>, vector<32x612xbf16>,
    %c0_12 = arith.constant 0 : index
    %c2 = arith.constant 2 : index
    %11 = vector.load %arg8[%c0_12, %c2] : memref<32x650xbf16, #tpu.memory_space<vmem>>, vector<32x612xbf16>
    %c64 = arith.constant 64 : index
    %c0_13 = arith.constant 0 : index
    %12 = vector.load %arg9[%c64, %c0_13] : memref<288x612xbf16, #tpu.memory_space<vmem>>, vector<32x612xbf16>
    tpu.vector_store %arg9[%c64, %c0_13], %11 {strides = array<i32>} : memref<288x612xbf16, #tpu.memory_space<vmem>>, vector<32x612xbf16>,
    %c0_14 = arith.constant 0 : index
    %c18 = arith.constant 18 : index
    %13 = vector.load %arg8[%c0_14, %c18] : memref<32x650xbf16, #tpu.memory_space<vmem>>, vector<32x612xbf16>
    %c96 = arith.constant 96 : index
    %c0_15 = arith.constant 0 : index
    %14 = vector.load %arg9[%c96, %c0_15] : memref<288x612xbf16, #tpu.memory_space<vmem>>, vector<32x612xbf16>
    tpu.vector_store %arg9[%c96, %c0_15], %13 {strides = array<i32>} : memref<288x612xbf16, #tpu.memory_space<vmem>>, vector<32x612xbf16>,
    %c0_16 = arith.constant 0 : index
    %c19_17 = arith.constant 19 : index
    %15 = vector.load %arg8[%c0_16, %c19_17] : memref<32x650xbf16, #tpu.memory_space<vmem>>, vector<32x612xbf16>
    %c128 = arith.constant 128 : index
    %c0_18 = arith.constant 0 : index
    %16 = vector.load %arg9[%c128, %c0_18] : memref<288x612xbf16, #tpu.memory_space<vmem>>, vector<32x612xbf16>
    tpu.vector_store %arg9[%c128, %c0_18], %15 {strides = array<i32>} : memref<288x612xbf16, #tpu.memory_space<vmem>>, vector<32x612xbf16>,
    %c0_19 = arith.constant 0 : index
    %c20 = arith.constant 20 : index
    %17 = vector.load %arg8[%c0_19, %c20] : memref<32x650xbf16, #tpu.memory_space<vmem>>, vector<32x612xbf16>
    %c160 = arith.constant 160 : index
    %c0_20 = arith.constant 0 : index
    %18 = vector.load %arg9[%c160, %c0_20] : memref<288x612xbf16, #tpu.memory_space<vmem>>, vector<32x612xbf16>
    tpu.vector_store %arg9[%c160, %c0_20], %17 {strides = array<i32>} : memref<288x612xbf16, #tpu.memory_space<vmem>>, vector<32x612xbf16>,
    %c0_21 = arith.constant 0 : index
    %c36 = arith.constant 36 : index
    %19 = vector.load %arg8[%c0_21, %c36] : memref<32x650xbf16, #tpu.memory_space<vmem>>, vector<32x612xbf16>
    %c192 = arith.constant 192 : index
    %c0_22 = arith.constant 0 : index
    %20 = vector.load %arg9[%c192, %c0_22] : memref<288x612xbf16, #tpu.memory_space<vmem>>, vector<32x612xbf16>
    tpu.vector_store %arg9[%c192, %c0_22], %19 {strides = array<i32>} : memref<288x612xbf16, #tpu.memory_space<vmem>>, vector<32x612xbf16>,
    %c0_23 = arith.constant 0 : index
    %c37 = arith.constant 37 : index
    %21 = vector.load %arg8[%c0_23, %c37] : memref<32x650xbf16, #tpu.memory_space<vmem>>, vector<32x612xbf16>
    %c224 = arith.constant 224 : index
    %c0_24 = arith.constant 0 : index
    %22 = vector.load %arg9[%c224, %c0_24] : memref<288x612xbf16, #tpu.memory_space<vmem>>, vector<32x612xbf16>
    tpu.vector_store %arg9[%c224, %c0_24], %21 {strides = array<i32>} : memref<288x612xbf16, #tpu.memory_space<vmem>>, vector<32x612xbf16>,
    %c0_25 = arith.constant 0 : index
    %c38 = arith.constant 38 : index
    %23 = vector.load %arg8[%c0_25, %c38] : memref<32x650xbf16, #tpu.memory_space<vmem>>, vector<32x612xbf16>
    %c256 = arith.constant 256 : index
    %c0_26 = arith.constant 0 : index
    %24 = vector.load %arg9[%c256, %c0_26] : memref<288x612xbf16, #tpu.memory_space<vmem>>, vector<32x612xbf16>
    tpu.vector_store %arg9[%c256, %c0_26], %23 {strides = array<i32>} : memref<288x612xbf16, #tpu.memory_space<vmem>>, vector<32x612xbf16>,
    %c0_27 = arith.constant 0 : index
    %c0_28 = arith.constant 0 : index
    %25 = vector.load %arg3[%c0_27, %c0_28] : memref<32x288xbf16, #tpu.memory_space<vmem>>, vector<32x288xbf16>
    %c0_29 = arith.constant 0 : index
    %c0_30 = arith.constant 0 : index
    %26 = vector.load %arg9[%c0_29, %c0_30] : memref<288x612xbf16, #tpu.memory_space<vmem>>, vector<288x612xbf16>
    %cst_31 = arith.constant dense<0.000000e+00> : vector<32x612xf32>
    %27 = tpu.matmul %25, %26, %cst_31 {dimension_numbers = #tpu.dot_dimension_numbers<[1], [0], [0], [1], [0, 0, 1, 1], [], []>} : vector<32x288xbf16>, vector<288x612xbf16>, vector<32x612xf32> -> vector<32x612xf32>
    %c0_32 = arith.constant 0 : index
    %c0_33 = arith.constant 0 : index
    %28 = vector.load %arg4[%c0_32, %c0_33] : memref<32x1xf32, #tpu.memory_space<vmem>>, vector<32x1xf32>
    %29 = vector.broadcast %28 : vector<32x1xf32> to vector<32x612xf32>
    %30 = arith.addf %27, %29 : vector<32x612xf32>
    %cst_34 = arith.constant 0.000000e+00 : f32
    %31 = vector.broadcast %cst_34 : f32 to vector<32x612xf32>
    %32 = arith.maximumf %30, %31 : vector<32x612xf32>
    %c0_35 = arith.constant 0 : index
    %c0_36 = arith.constant 0 : index
    %33 = vector.load %arg1[%c0_35, %c0_36] : memref<1x612xf32, #tpu.memory_space<vmem>>, vector<1x612xf32>
    %34 = vector.broadcast %33 : vector<1x612xf32> to vector<32x612xf32>
    %35 = arith.mulf %32, %34 : vector<32x612xf32>
    %36 = arith.truncf %35 : vector<32x612xf32> to vector<32x612xbf16>
    %c0_37 = arith.constant 0 : index
    %c19_38 = arith.constant 19 : index
    %37 = vector.load %arg8[%c0_37, %c19_38] : memref<32x650xbf16, #tpu.memory_space<vmem>>, vector<32x612xbf16>
    tpu.vector_store %arg8[%c0_37, %c19_38], %36 {strides = array<i32>} : memref<32x650xbf16, #tpu.memory_space<vmem>>, vector<32x612xbf16>,
    %c0_39 = arith.constant 0 : index
    %c0_40 = arith.constant 0 : index
    %38 = vector.load %arg8[%c0_39, %c0_40] : memref<32x650xbf16, #tpu.memory_space<vmem>>, vector<32x612xbf16>
    %c0_41 = arith.constant 0 : index
    %c0_42 = arith.constant 0 : index
    %39 = vector.load %arg9[%c0_41, %c0_42] : memref<288x612xbf16, #tpu.memory_space<vmem>>, vector<32x612xbf16>
    tpu.vector_store %arg9[%c0_41, %c0_42], %38 {strides = array<i32>} : memref<288x612xbf16, #tpu.memory_space<vmem>>, vector<32x612xbf16>,
    %c0_43 = arith.constant 0 : index
    %c1_44 = arith.constant 1 : index
    %40 = vector.load %arg8[%c0_43, %c1_44] : memref<32x650xbf16, #tpu.memory_space<vmem>>, vector<32x612xbf16>
    %c32_45 = arith.constant 32 : index
    %c0_46 = arith.constant 0 : index
    %41 = vector.load %arg9[%c32_45, %c0_46] : memref<288x612xbf16, #tpu.memory_space<vmem>>, vector<32x612xbf16>
    tpu.vector_store %arg9[%c32_45, %c0_46], %40 {strides = array<i32>} : memref<288x612xbf16, #tpu.memory_space<vmem>>, vector<32x612xbf16>,
    %c0_47 = arith.constant 0 : index
    %c2_48 = arith.constant 2 : index
    %42 = vector.load %arg8[%c0_47, %c2_48] : memref<32x650xbf16, #tpu.memory_space<vmem>>, vector<32x612xbf16>
    %c64_49 = arith.constant 64 : index
    %c0_50 = arith.constant 0 : index
    %43 = vector.load %arg9[%c64_49, %c0_50] : memref<288x612xbf16, #tpu.memory_space<vmem>>, vector<32x612xbf16>
    tpu.vector_store %arg9[%c64_49, %c0_50], %42 {strides = array<i32>} : memref<288x612xbf16, #tpu.memory_space<vmem>>, vector<32x612xbf16>,
    %c0_51 = arith.constant 0 : index
    %c18_52 = arith.constant 18 : index
    %44 = vector.load %arg8[%c0_51, %c18_52] : memref<32x650xbf16, #tpu.memory_space<vmem>>, vector<32x612xbf16>
    %c96_53 = arith.constant 96 : index
    %c0_54 = arith.constant 0 : index
    %45 = vector.load %arg9[%c96_53, %c0_54] : memref<288x612xbf16, #tpu.memory_space<vmem>>, vector<32x612xbf16>
    tpu.vector_store %arg9[%c96_53, %c0_54], %44 {strides = array<i32>} : memref<288x612xbf16, #tpu.memory_space<vmem>>, vector<32x612xbf16>,
    %c0_55 = arith.constant 0 : index
    %c19_56 = arith.constant 19 : index
    %46 = vector.load %arg8[%c0_55, %c19_56] : memref<32x650xbf16, #tpu.memory_space<vmem>>, vector<32x612xbf16>
    %c128_57 = arith.constant 128 : index
    %c0_58 = arith.constant 0 : index
    %47 = vector.load %arg9[%c128_57, %c0_58] : memref<288x612xbf16, #tpu.memory_space<vmem>>, vector<32x612xbf16>
    tpu.vector_store %arg9[%c128_57, %c0_58], %46 {strides = array<i32>} : memref<288x612xbf16, #tpu.memory_space<vmem>>, vector<32x612xbf16>,
    %c0_59 = arith.constant 0 : index
    %c20_60 = arith.constant 20 : index
    %48 = vector.load %arg8[%c0_59, %c20_60] : memref<32x650xbf16, #tpu.memory_space<vmem>>, vector<32x612xbf16>
    %c160_61 = arith.constant 160 : index
    %c0_62 = arith.constant 0 : index
    %49 = vector.load %arg9[%c160_61, %c0_62] : memref<288x612xbf16, #tpu.memory_space<vmem>>, vector<32x612xbf16>
    tpu.vector_store %arg9[%c160_61, %c0_62], %48 {strides = array<i32>} : memref<288x612xbf16, #tpu.memory_space<vmem>>, vector<32x612xbf16>,
    %c0_63 = arith.constant 0 : index
    %c36_64 = arith.constant 36 : index
    %50 = vector.load %arg8[%c0_63, %c36_64] : memref<32x650xbf16, #tpu.memory_space<vmem>>, vector<32x612xbf16>
    %c192_65 = arith.constant 192 : index
    %c0_66 = arith.constant 0 : index
    %51 = vector.load %arg9[%c192_65, %c0_66] : memref<288x612xbf16, #tpu.memory_space<vmem>>, vector<32x612xbf16>
    tpu.vector_store %arg9[%c192_65, %c0_66], %50 {strides = array<i32>} : memref<288x612xbf16, #tpu.memory_space<vmem>>, vector<32x612xbf16>,
    %c0_67 = arith.constant 0 : index
    %c37_68 = arith.constant 37 : index
    %52 = vector.load %arg8[%c0_67, %c37_68] : memref<32x650xbf16, #tpu.memory_space<vmem>>, vector<32x612xbf16>
    %c224_69 = arith.constant 224 : index
    %c0_70 = arith.constant 0 : index
    %53 = vector.load %arg9[%c224_69, %c0_70] : memref<288x612xbf16, #tpu.memory_space<vmem>>, vector<32x612xbf16>
    tpu.vector_store %arg9[%c224_69, %c0_70], %52 {strides = array<i32>} : memref<288x612xbf16, #tpu.memory_space<vmem>>, vector<32x612xbf16>,
    %c0_71 = arith.constant 0 : index
    %c38_72 = arith.constant 38 : index
    %54 = vector.load %arg8[%c0_71, %c38_72] : memref<32x650xbf16, #tpu.memory_space<vmem>>, vector<32x612xbf16>
    %c256_73 = arith.constant 256 : index
    %c0_74 = arith.constant 0 : index
    %55 = vector.load %arg9[%c256_73, %c0_74] : memref<288x612xbf16, #tpu.memory_space<vmem>>, vector<32x612xbf16>
    tpu.vector_store %arg9[%c256_73, %c0_74], %54 {strides = array<i32>} : memref<288x612xbf16, #tpu.memory_space<vmem>>, vector<32x612xbf16>,
    %c0_75 = arith.constant 0 : index
    %c0_76 = arith.constant 0 : index
    %56 = vector.load %arg5[%c0_75, %c0_76] : memref<32x288xbf16, #tpu.memory_space<vmem>>, vector<32x288xbf16>
    %c0_77 = arith.constant 0 : index
    %c0_78 = arith.constant 0 : index
    %57 = vector.load %arg9[%c0_77, %c0_78] : memref<288x612xbf16, #tpu.memory_space<vmem>>, vector<288x612xbf16>
    %cst_79 = arith.constant dense<0.000000e+00> : vector<32x612xf32>
    %58 = tpu.matmul %56, %57, %cst_79 {dimension_numbers = #tpu.dot_dimension_numbers<[1], [0], [0], [1], [0, 0, 1, 1], [], []>} : vector<32x288xbf16>, vector<288x612xbf16>, vector<32x612xf32> -> vector<32x612xf32>
    %c0_80 = arith.constant 0 : index
    %c0_81 = arith.constant 0 : index
    %59 = vector.load %arg6[%c0_80, %c0_81] : memref<32x1xf32, #tpu.memory_space<vmem>>, vector<32x1xf32>
    %60 = vector.broadcast %59 : vector<32x1xf32> to vector<32x612xf32>
    %61 = arith.addf %58, %60 : vector<32x612xf32>
    %62 = arith.addf %4, %61 : vector<32x612xf32>
    %c0_82 = arith.constant 0 : index
    %c0_83 = arith.constant 0 : index
    %c0_84 = arith.constant 0 : index
    %63 = vector.load %arg7[%c0_82, %c0_83, %c0_84] : memref<1x32x612xf32, #tpu.memory_space<vmem>>, vector<1x32x612xf32>
    %64 = vector.shape_cast %63 : vector<1x32x612xf32> to vector<32x612xf32>
    %65 = vector.shape_cast %62 : vector<32x612xf32> to vector<1x32x612xf32>
    tpu.vector_store %arg7[%c0_82, %c0_83, %c0_84], %65 {strides = array<i32>} : memref<1x32x612xf32, #tpu.memory_space<vmem>>, vector<1x32x612xf32>,
    return
  }
  func.func @transform_0(%arg0: i32) -> (i32, i32) {
    %c0_i32 = arith.constant 0 : i32
    %c0_i32_0 = arith.constant 0 : i32
    %c0_i32_1 = arith.constant 0 : i32
    return %c0_i32, %c0_i32_0 : i32, i32
  }
  func.func @transform_1(%arg0: i32) -> (i32, i32, i32) {
    %c0_i32 = arith.constant 0 : i32
    %c0_i32_0 = arith.constant 0 : i32
    %c0_i32_1 = arith.constant 0 : i32
    return %arg0, %c0_i32, %c0_i32_0 : i32, i32, i32
  }
  func.func @transform_2(%arg0: i32) -> (i32, i32) {
    %c0_i32 = arith.constant 0 : i32
    %c0_i32_0 = arith.constant 0 : i32
    %c0_i32_1 = arith.constant 0 : i32
    return %c0_i32, %c0_i32_0 : i32, i32
  }
  func.func @transform_3(%arg0: i32) -> (i32, i32) {
    %c0_i32 = arith.constant 0 : i32
    %c0_i32_0 = arith.constant 0 : i32
    %c0_i32_1 = arith.constant 0 : i32
    return %c0_i32, %c0_i32_0 : i32, i32
  }
  func.func @transform_4(%arg0: i32) -> (i32, i32) {
    %c0_i32 = arith.constant 0 : i32
    %c0_i32_0 = arith.constant 0 : i32
    %c0_i32_1 = arith.constant 0 : i32
    return %c0_i32, %c0_i32_0 : i32, i32
  }
  func.func @transform_5(%arg0: i32) -> (i32, i32) {
    %c0_i32 = arith.constant 0 : i32
    %c0_i32_0 = arith.constant 0 : i32
    %c0_i32_1 = arith.constant 0 : i32
    return %c0_i32, %c0_i32_0 : i32, i32
  }
  func.func @transform_6(%arg0: i32) -> (i32, i32, i32) {
    %c0_i32 = arith.constant 0 : i32
    %c0_i32_0 = arith.constant 0 : i32
    %c0_i32_1 = arith.constant 0 : i32
    return %arg0, %c0_i32, %c0_i32_0 : i32, i32, i32
  }
}

</mosaic_0001>

<llo_original>
// kernel: residual_block_nobn.1
$region0: #{residual_block_nobn.1}
  #allocation0 [shape = 'u32[]', space=smem, size = 0x4, offset = 0x4, fixed_abs, tag = 'smem constant byte address 0x4 - core index']
  #allocation1 [shape = 'u32[144,128]{1,0:T(1,128)}', space=vmem, size = 0x12000, scoped, tag = 'internal scratch']
  #allocation2 [shape = 'bf16[32,650]{1,0:T(16,128)(2,1)}', space=vmem, size = 0xc000, scoped, tag = 'scratch operand']
  #allocation3 [shape = 'bf16[288,612]{1,0:T(16,128)(2,1)}', space=vmem, size = 0x5a000, scoped, tag = 'scratch operand']
  %s0 = inlined_call_operand.vmem [shape: f32[1,612], index: 0, kind: input, shape index: {}]
  %s1 = inlined_call_operand.vmem [shape: f32[2,32,612], index: 1, kind: input, shape index: {}]
  %s2 = inlined_call_operand.vmem [shape: bf16[32,288], index: 2, kind: input, shape index: {}]
  %s3 = inlined_call_operand.vmem [shape: f32[32,1], index: 3, kind: input, shape index: {}]
  %s4 = inlined_call_operand.vmem [shape: bf16[32,288], index: 4, kind: input, shape index: {}]
  %s5 = inlined_call_operand.vmem [shape: f32[32,1], index: 5, kind: input, shape index: {}]
  %s6 = inlined_call_operand.vmem [shape: f32[2,32,612], index: 6, kind: output, shape index: {}]
  %s7 = sld [smem:[#allocation0]]
  $region57: #{residual_block_nobn.1} parent=0
    _
  %s9 = ssub.s32 1, %s7
  %s10 = scalar_select 0, %s9, %s7
  loop: start=0, step=1, limit=4
  $region2: #{residual_block_nobn.1} parent=0 // loop_pre_header
    _
  $region3: #{residual_block_nobn.1} parent=0 // loop_header
    %s12 = sphi 0, %s16
    %p13 = scmp.ge.s32.totalorder %s12, 4
    %s20 = sphi 0, %s20
    %s22 = sphi 0, %s20
    %s23 = sphi 0, %s22
    %s37 = sphi 0, %s23
    %s43 = sphi 0, %s45
    %s46 = sphi 0, %s43
    %s47 = sphi 0, %s46
    %s63 = sphi 0, %s47
    %s67 = sphi 0, %s67
    %s69 = sphi 0, %s67
    %s70 = sphi 0, %s69
    %s84 = sphi 0, %s70
    %s88 = sphi 0, %s88
    %s90 = sphi 0, %s88
    %s91 = sphi 0, %s90
    %s105 = sphi 0, %s91
    %s109 = sphi 0, %s109
    %s111 = sphi 0, %s109
    %s112 = sphi 0, %s111
    %s126 = sphi 0, %s112
    %s130 = sphi 0, %s130
    %s132 = sphi 0, %s130
    %s133 = sphi 0, %s132
    %s147 = sphi 0, %s133
    %s153 = sphi 0, %s155
    %s156 = sphi 0, %s153
    %s157 = sphi 0, %s156
    %s173 = sphi 0, %s157
  $region4: #{residual_block_nobn.1} parent=0 // loop_header_branch
    %15 = sbr.rel (%p13) target = $region8
  $region5: #{residual_block_nobn.1} parent=0 // loop_body
    %s17 = ssub.s32 %s12, 1
    %s18 = ssub.s32 %s12, 2
    %s19 = sadd.s32 %s12, 1
    %s21 = sadd.s32 %s20, 1
    %p24 = scmp.eq.s32.totalorder %s12, 1
    %p25 = scmp.ne.s32.totalorder %s20, %s22
    %p26 = scmp.eq.s32.totalorder %s12, 0
    %p27 = por %p25, %p26
    %p28 = scmp.ne.s32.totalorder %s20, %s22
    %p29 = scmp.eq.s32.totalorder %s17, 1
    %p30 = por %p28, %p29
    %p31 = scmp.ne.s32.totalorder %s22, %s23
    %p32 = scmp.eq.s32.totalorder %s17, 0
    %p33 = por %p31, %p32
    %p34 = scmp.ne.s32.totalorder %s22, %s23
    %p35 = scmp.eq.s32.totalorder %s18, 1
    %p36 = por %p34, %p35
    %p38 = scmp.ne.s32.totalorder %s23, %s37
    %p39 = scmp.eq.s32.totalorder %s18, 0
    %p40 = por %p38, %p39
    %s41 = ssub.s32 %s12, %s19
    %p42 = scmp.eq.s32.totalorder %s41, 0
    %s44 = sadd.s32 %s43, 1
    %s45 = scalar_select %p42, %s43, %s44
    %p48 = pneg %p42
    %p49 = scmp.eq.s32.totalorder %s12, 1
    %p50 = por %p48, %p49
    %p51 = scmp.ne.s32.totalorder %s43, %s46
    %p52 = scmp.eq.s32.totalorder %s12, 0
    %p53 = por %p51, %p52
    %p54 = scmp.ne.s32.totalorder %s43, %s46
    %p55 = scmp.eq.s32.totalorder %s17, 1
    %p56 = por %p54, %p55
    %p57 = scmp.ne.s32.totalorder %s46, %s47
    %p58 = scmp.eq.s32.totalorder %s17, 0
    %p59 = por %p57, %p58
    %p60 = scmp.ne.s32.totalorder %s46, %s47
    %p61 = scmp.eq.s32.totalorder %s18, 1
    %p62 = por %p60, %p61
    %p64 = scmp.ne.s32.totalorder %s47, %s63
    %p65 = scmp.eq.s32.totalorder %s18, 0
    %p66 = por %p64, %p65
    %s68 = sadd.s32 %s67, 1
    %p71 = scmp.eq.s32.totalorder %s12, 1
    %p72 = scmp.ne.s32.totalorder %s67, %s69
    %p73 = scmp.eq.s32.totalorder %s12, 0
    %p74 = por %p72, %p73
    %p75 = scmp.ne.s32.totalorder %s67, %s69
    %p76 = scmp.eq.s32.totalorder %s17, 1
    %p77 = por %p75, %p76
    %p78 = scmp.ne.s32.totalorder %s69, %s70
    %p79 = scmp.eq.s32.totalorder %s17, 0
    %p80 = por %p78, %p79
    %p81 = scmp.ne.s32.totalorder %s69, %s70
    %p82 = scmp.eq.s32.totalorder %s18, 1
    %p83 = por %p81, %p82
    %p85 = scmp.ne.s32.totalorder %s70, %s84
    %p86 = scmp.eq.s32.totalorder %s18, 0
    %p87 = por %p85, %p86
    %s89 = sadd.s32 %s88, 1
    %p92 = scmp.eq.s32.totalorder %s12, 1
    %p93 = scmp.ne.s32.totalorder %s88, %s90
    %p94 = scmp.eq.s32.totalorder %s12, 0
    %p95 = por %p93, %p94
    %p96 = scmp.ne.s32.totalorder %s88, %s90
    %p97 = scmp.eq.s32.totalorder %s17, 1
    %p98 = por %p96, %p97
    %p99 = scmp.ne.s32.totalorder %s90, %s91
    %p100 = scmp.eq.s32.totalorder %s17, 0
    %p101 = por %p99, %p100
    %p102 = scmp.ne.s32.totalorder %s90, %s91
    %p103 = scmp.eq.s32.totalorder %s18, 1
    %p104 = por %p102, %p103
    %p106 = scmp.ne.s32.totalorder %s91, %s105
    %p107 = scmp.eq.s32.totalorder %s18, 0
    %p108 = por %p106, %p107
    %s110 = sadd.s32 %s109, 1
    %p113 = scmp.eq.s32.totalorder %s12, 1
    %p114 = scmp.ne.s32.totalorder %s109, %s111
    %p115 = scmp.eq.s32.totalorder %s12, 0
    %p116 = por %p114, %p115
    %p117 = scmp.ne.s32.totalorder %s109, %s111
    %p118 = scmp.eq.s32.totalorder %s17, 1
    %p119 = por %p117, %p118
    %p120 = scmp.ne.s32.totalorder %s111, %s112
    %p121 = scmp.eq.s32.totalorder %s17, 0
    %p122 = por %p120, %p121
    %p123 = scmp.ne.s32.totalorder %s111, %s112
    %p124 = scmp.eq.s32.totalorder %s18, 1
    %p125 = por %p123, %p124
    %p127 = scmp.ne.s32.totalorder %s112, %s126
    %p128 = scmp.eq.s32.totalorder %s18, 0
    %p129 = por %p127, %p128
    %s131 = sadd.s32 %s130, 1
    %p134 = scmp.eq.s32.totalorder %s12, 1
    %p135 = scmp.ne.s32.totalorder %s130, %s132
    %p136 = scmp.eq.s32.totalorder %s12, 0
    %p137 = por %p135, %p136
    %p138 = scmp.ne.s32.totalorder %s130, %s132
    %p139 = scmp.eq.s32.totalorder %s17, 1
    %p140 = por %p138, %p139
    %p141 = scmp.ne.s32.totalorder %s132, %s133
    %p142 = scmp.eq.s32.totalorder %s17, 0
    %p143 = por %p141, %p142
    %p144 = scmp.ne.s32.totalorder %s132, %s133
    %p145 = scmp.eq.s32.totalorder %s18, 1
    %p146 = por %p144, %p145
    %p148 = scmp.ne.s32.totalorder %s133, %s147
    %p149 = scmp.eq.s32.totalorder %s18, 0
    %p150 = por %p148, %p149
    %s151 = ssub.s32 %s12, %s19
    %p152 = scmp.eq.s32.totalorder %s151, 0
    %s154 = sadd.s32 %s153, 1
    %s155 = scalar_select %p152, %s153, %s154
    %p158 = pneg %p152
    %p159 = scmp.eq.s32.totalorder %s12, 1
    %p160 = por %p158, %p159
    %p161 = scmp.ne.s32.totalorder %s153, %s156
    %p162 = scmp.eq.s32.totalorder %s12, 0
    %p163 = por %p161, %p162
    %p164 = scmp.ne.s32.totalorder %s153, %s156
    %p165 = scmp.eq.s32.totalorder %s17, 1
    %p166 = por %p164, %p165
    %p167 = scmp.ne.s32.totalorder %s156, %s157
    %p168 = scmp.eq.s32.totalorder %s17, 0
    %p169 = por %p167, %p168
    %p170 = scmp.ne.s32.totalorder %s156, %s157
    %p171 = scmp.eq.s32.totalorder %s18, 1
    %p172 = por %p170, %p171
    %p174 = scmp.ne.s32.totalorder %s157, %s173
    %p175 = scmp.eq.s32.totalorder %s18, 0
    %p176 = por %p174, %p175
    %p177 = scmp.le.s32.totalorder 1, %s12
    %p178 = scmp.lt.s32.totalorder %s12, 3
    %p179 = pnand %p177, %p178
    %p180 = pneg %p179
    // Predicated region
    $region9: #{residual_block_nobn.1} parent=5 // pred_check
      _
    $region10: #{residual_block_nobn.1} parent=5 // pred_check_branch
      %182 = sbr.rel (%p179) target = $region12
    $region11: #{residual_block_nobn.1} parent=5 // pred_region
      %s183 = ssub.s32 %s12, 1
      // Predicated region
      $region13: #{residual_block_nobn.1} parent=11 // pred_check
        %p184 = pneg %p33
      $region14: #{residual_block_nobn.1} parent=11 // pred_check_branch
        %186 = sbr.rel (%p184) target = $region16
      $region15: #{residual_block_nobn.1} parent=11 // pred_region
        _
      $region16: #{residual_block_nobn.1} parent=11 // pred_fallthru
        _
      // Predicated region
      $region17: #{residual_block_nobn.1} parent=11 // pred_check
        %p187 = pneg %p80
      $region18: #{residual_block_nobn.1} parent=11 // pred_check_branch
        %189 = sbr.rel (%p187) target = $region20
      $region19: #{residual_block_nobn.1} parent=11 // pred_region
        _
      $region20: #{residual_block_nobn.1} parent=11 // pred_fallthru
        _
      // Predicated region
      $region21: #{residual_block_nobn.1} parent=11 // pred_check
        %p190 = pneg %p101
      $region22: #{residual_block_nobn.1} parent=11 // pred_check_branch
        %192 = sbr.rel (%p190) target = $region24
      $region23: #{residual_block_nobn.1} parent=11 // pred_region
        _
      $region24: #{residual_block_nobn.1} parent=11 // pred_fallthru
        _
      // Predicated region
      $region25: #{residual_block_nobn.1} parent=11 // pred_check
        %p193 = pneg %p122
      $region26: #{residual_block_nobn.1} parent=11 // pred_check_branch
        %195 = sbr.rel (%p193) target = $region28
      $region27: #{residual_block_nobn.1} parent=11 // pred_region
        _
      $region28: #{residual_block_nobn.1} parent=11 // pred_fallthru
        _
      // Predicated region
      $region29: #{residual_block_nobn.1} parent=11 // pred_check
        %p196 = pneg %p143
      $region30: #{residual_block_nobn.1} parent=11 // pred_check_branch
        %198 = sbr.rel (%p196) target = $region32
      $region31: #{residual_block_nobn.1} parent=11 // pred_region
        _
      $region32: #{residual_block_nobn.1} parent=11 // pred_fallthru
        _
    $region12: #{residual_block_nobn.1} parent=5 // pred_fallthru
      _
    %p199 = scmp.lt.s32.totalorder %s12, 2
    // Predicated region
    $region33: #{residual_block_nobn.1} parent=5 // pred_check
      %p200 = pneg %p199
    $region34: #{residual_block_nobn.1} parent=5 // pred_check_branch
      %202 = sbr.rel (%p200) target = $region36
    $region35: #{residual_block_nobn.1} parent=5 // pred_region
      // Predicated region
      $region37: #{residual_block_nobn.1} parent=35 // pred_check
        %p203 = pneg %p53
      $region38: #{residual_block_nobn.1} parent=35 // pred_check_branch
        %205 = sbr.rel (%p203) target = $region40
      $region39: #{residual_block_nobn.1} parent=35 // pred_region
        %p206 = scmp.lt.s32.totalorder %s12, 1
        %s207 = scalar_select %p206, %s12, 1
        %s208 = smul.addr %s207, 20
        %s209 = smul.addr %s208, 8
        %s210 = scalar_lea.vmem %s1, %s209
      $region40: #{residual_block_nobn.1} parent=35 // pred_fallthru
        _
    $region36: #{residual_block_nobn.1} parent=5 // pred_fallthru
      _
    %p211 = scmp.le.s32.totalorder 1, %s12
    %p212 = scmp.lt.s32.totalorder %s12, 3
    %p213 = pnand %p211, %p212
    %p214 = pneg %p213
    // Predicated region
    $region41: #{residual_block_nobn.1} parent=5 // pred_check
      _
    $region42: #{residual_block_nobn.1} parent=5 // pred_check_branch
      %216 = sbr.rel (%p213) target = $region44
    $region43: #{residual_block_nobn.1} parent=5 // pred_region
      %s217 = ssub.s32 %s12, 1
      %p218 = pneg %p33
      %p219 = pneg %p30
      %p220 = scmp.lt.s32.totalorder %s17, 1
      %s221 = scalar_select %p220, %s17, 1
      %s222 = smul.addr %s221, 20
      %s223 = smul.addr %s222, 8
      %s224 = scalar_lea.vmem %s1, %s223
      %p225 = pneg %p59
      %p226 = pneg %p56
      %p227 = pneg %p80
      %p228 = pneg %p77
      %p229 = pneg %p101
      %p230 = pneg %p98
      %p231 = pneg %p122
      %p232 = pneg %p119
      %p233 = pneg %p143
      %p234 = pneg %p140
      %p235 = pneg %p169
      %p236 = pneg %p166
      %p237 = scmp.lt.s32.totalorder %s17, 1
      %s238 = scalar_select %p237, %s17, 1
      %s239 = smul.addr %s238, 20
      %s240 = smul.addr %s239, 8
      %s241 = scalar_lea.vmem %s6, %s240
      %p242 = scmp.lt.s32.totalorder %s17, 1
      %s243 = scalar_select %p242, %s17, 1
      %s244 = smul.addr %s243, 20
      %s245 = smul.addr %s244, 8
      %s246 = scalar_lea.vmem %s1, %s245
      %p247 = scmp.lt.s32.totalorder %s17, 1
      %s248 = scalar_select %p247, %s17, 1
      %s249 = smul.addr %s248, 20
      %s250 = smul.addr %s249, 8
      %s251 = scalar_lea.vmem %s6, %s250
      %vm253 = vcmask 154624
      %254 = vst.msk [vmem:[#allocation2] sm:$0xff] %vm253, 0
      %255 = vst.msk [vmem:[#allocation2 + $0x30] sm:$0xff] %vm253, 0
      %vm256 = vcmask 1048504
      %257 = vst.msk [vmem:[#allocation2 + $0x20] sm:$0xff] %vm256, 0
      %vm258 = vcmask 80896
      %259 = vst.msk [vmem:[#allocation2 + $0x28] sm:$0xff] %vm258, 0
      %260 = vst.msk [vmem:[#allocation2 + $0x50] sm:$0xff] %vm256, 0
      %261 = vst.msk [vmem:[#allocation2 + $0x58] sm:$0xff] %vm258, 0
      %v262 = vld [vmem:[%s246] sm:$0xff]
      %v263 = vld [vmem:[%s246 + $0x8] sm:$0xff]
      %v264 = vld [vmem:[%s246 + $0x10] sm:$0xff]
      %v265 = vld [vmem:[%s246 + $0x18] sm:$0xff]
      %v266 = vld [vmem:[%s246 + $0x20] sm:$0xff]
      %v267 = vld [vmem:[%s246 + $0x28] sm:$0xff]
      %v268 = vld [vmem:[%s246 + $0x30] sm:$0xff]
      %v269 = vld [vmem:[%s246 + $0x38] sm:$0xff]
      %v270 = vld [vmem:[%s246 + $0x40] sm:$0xff]
      %v271 = vld [vmem:[%s246 + $0x48] sm:$0xff]
      %v272 = vld [vmem:[%s246 + $0x50] sm:$0xff]
      %v273 = vld [vmem:[%s246 + $0x58] sm:$0xff]
      %v274 = vld [vmem:[%s246 + $0x60] sm:$0xff]
      %v275 = vld [vmem:[%s246 + $0x68] sm:$0xff]
      %v276 = vld [vmem:[%s246 + $0x70] sm:$0xff]
      %v277 = vld [vmem:[%s246 + $0x78] sm:$0xff]
      %v278 = vld [vmem:[%s246 + $0x80] sm:$0xff]
      %v279 = vld [vmem:[%s246 + $0x88] sm:$0xff]
      %v280 = vld [vmem:[%s246 + $0x90] sm:$0xff]
      %v281 = vld [vmem:[%s246 + $0x98] sm:$0xff]
      %v282 = vpack.c.bf16 %v267, %v262
      %v283 = vpack.c.bf16 %v268, %v263
      %v284 = vpack.c.bf16 %v269, %v264
      %v285 = vpack.c.bf16 %v270, %v265
      %v286 = vpack.c.bf16 %v271, %v266
      %v287 = vpack.c.bf16 %v277, %v272
      %v288 = vpack.c.bf16 %v278, %v273
      %v289 = vpack.c.bf16 %v279, %v274
      %v290 = vpack.c.bf16 %v280, %v275
      %v291 = vpack.c.bf16 %v281, %v276
      %302 = vrot.lane.b32.xlu0 %v282, 19
      %v303 = vpop.permute.xlu0 %302
      %304 = vrot.lane.b32.xlu0 %v283, 19
      %v305 = vpop.permute.xlu0 %304
      %306 = vrot.lane.b32.xlu0 %v284, 19
      %v307 = vpop.permute.xlu0 %306
      %308 = vrot.lane.b32.xlu0 %v285, 19
      %v309 = vpop.permute.xlu0 %308
      %310 = vrot.lane.b32.xlu0 %v286, 19
      %v311 = vpop.permute.xlu0 %310
      %312 = vrot.lane.b32.xlu0 %v287, 19
      %v313 = vpop.permute.xlu0 %312
      %314 = vrot.lane.b32.xlu0 %v288, 19
      %v315 = vpop.permute.xlu0 %314
      %316 = vrot.lane.b32.xlu0 %v289, 19
      %v317 = vpop.permute.xlu0 %316
      %318 = vrot.lane.b32.xlu0 %v290, 19
      %v319 = vpop.permute.xlu0 %318
      %320 = vrot.lane.b32.xlu0 %v291, 19
      %v321 = vpop.permute.xlu0 %320
      %vm322 = vcmask 154624
      %v323 = vsel %vm322, %v303, %v305
      %v324 = vsel %vm322, %v305, %v307
      %v325 = vsel %vm322, %v307, %v309
      %v326 = vsel %vm322, %v309, %v311
      %v327 = vsel %vm322, %v313, %v315
      %v328 = vsel %vm322, %v315, %v317
      %v329 = vsel %vm322, %v317, %v319
      %v330 = vsel %vm322, %v319, %v321
      %vm341 = vcmask 1047704
      %342 = vst.msk [vmem:[#allocation2] sm:$0xff] %vm341, %v303
      %343 = vst [vmem:[#allocation2 + $0x8] sm:$0xff] %v323
      %344 = vst [vmem:[#allocation2 + $0x10] sm:$0xff] %v324
      %345 = vst [vmem:[#allocation2 + $0x18] sm:$0xff] %v325
      %vm346 = vcmask 973824
      %347 = vst.msk [vmem:[#allocation2 + $0x20] sm:$0xff] %vm346, %v326
      %348 = vst.msk [vmem:[#allocation2 + $0x30] sm:$0xff] %vm341, %v313
      %349 = vst [vmem:[#allocation2 + $0x38] sm:$0xff] %v327
      %350 = vst [vmem:[#allocation2 + $0x40] sm:$0xff] %v328
      %351 = vst [vmem:[#allocation2 + $0x48] sm:$0xff] %v329
      %352 = vst.msk [vmem:[#allocation2 + $0x50] sm:$0xff] %vm346, %v330
      %v353 = vld [vmem:[#allocation2] sm:$0xff]
      %v354 = vld [vmem:[#allocation2 + $0x8] sm:$0xff]
      %v355 = vld [vmem:[#allocation2 + $0x10] sm:$0xff]
      %v356 = vld [vmem:[#allocation2 + $0x18] sm:$0xff]
      %v357 = vld [vmem:[#allocation2 + $0x20] sm:$0xff]
      %v358 = vld [vmem:[#allocation2 + $0x30] sm:$0xff]
      %v359 = vld [vmem:[#allocation2 + $0x38] sm:$0xff]
      %v360 = vld [vmem:[#allocation2 + $0x40] sm:$0xff]
      %v361 = vld [vmem:[#allocation2 + $0x48] sm:$0xff]
      %v362 = vld [vmem:[#allocation2 + $0x50] sm:$0xff]
      %363 = vst [vmem:[#allocation3] sm:$0xff] %v353
      %364 = vst [vmem:[#allocation3 + $0x8] sm:$0xff] %v354
      %365 = vst [vmem:[#allocation3 + $0x10] sm:$0xff] %v355
      %366 = vst [vmem:[#allocation3 + $0x18] sm:$0xff] %v356
      %vm367 = vcmask 818176
      %368 = vst.msk [vmem:[#allocation3 + $0x20] sm:$0xff] %vm367, %v357
      %369 = vst [vmem:[#allocation3 + $0x28] sm:$0xff] %v358
      %370 = vst [vmem:[#allocation3 + $0x30] sm:$0xff] %v359
      %371 = vst [vmem:[#allocation3 + $0x38] sm:$0xff] %v360
      %372 = vst [vmem:[#allocation3 + $0x40] sm:$0xff] %v361
      %373 = vst.msk [vmem:[#allocation3 + $0x48] sm:$0xff] %vm367, %v362
      %v374 = vld [vmem:[#allocation2] sm:$0xff]
      %v375 = vld [vmem:[#allocation2 + $0x8] sm:$0xff]
      %v376 = vld [vmem:[#allocation2 + $0x10] sm:$0xff]
      %v377 = vld [vmem:[#allocation2 + $0x18] sm:$0xff]
      %v378 = vld [vmem:[#allocation2 + $0x20] sm:$0xff]
      %v379 = vld [vmem:[#allocation2 + $0x30] sm:$0xff]
      %v380 = vld [vmem:[#allocation2 + $0x38] sm:$0xff]
      %v381 = vld [vmem:[#allocation2 + $0x40] sm:$0xff]
      %v382 = vld [vmem:[#allocation2 + $0x48] sm:$0xff]
      %v383 = vld [vmem:[#allocation2 + $0x50] sm:$0xff]
      %394 = vrot.lane.b32.xlu0 %v374, 127
      %v395 = vpop.permute.xlu0 %394
      %396 = vrot.lane.b32.xlu0 %v375, 127
      %v397 = vpop.permute.xlu0 %396
      %398 = vrot.lane.b32.xlu0 %v376, 127
      %v399 = vpop.permute.xlu0 %398
      %400 = vrot.lane.b32.xlu0 %v377, 127
      %v401 = vpop.permute.xlu0 %400
      %402 = vrot.lane.b32.xlu0 %v378, 127
      %v403 = vpop.permute.xlu0 %402
      %404 = vrot.lane.b32.xlu0 %v379, 127
      %v405 = vpop.permute.xlu0 %404
      %406 = vrot.lane.b32.xlu0 %v380, 127
      %v407 = vpop.permute.xlu0 %406
      %408 = vrot.lane.b32.xlu0 %v381, 127
      %v409 = vpop.permute.xlu0 %408
      %410 = vrot.lane.b32.xlu0 %v382, 127
      %v411 = vpop.permute.xlu0 %410
      %412 = vrot.lane.b32.xlu0 %v383, 127
      %v413 = vpop.permute.xlu0 %412
      %vm414 = vcmask 1039360
      %v415 = vsel %vm414, %v395, %v397
      %v416 = vsel %vm414, %v397, %v399
      %v417 = vsel %vm414, %v399, %v401
      %v418 = vsel %vm414, %v401, %v403
      %v419 = vsel %vm414, %v405, %v407
      %v420 = vsel %vm414, %v407, %v409
      %v421 = vsel %vm414, %v409, %v411
      %v422 = vsel %vm414, %v411, %v413
      %433 = vst [vmem:[#allocation3 + $0x50] sm:$0xff] %v415
      %434 = vst [vmem:[#allocation3 + $0x58] sm:$0xff] %v416
      %435 = vst [vmem:[#allocation3 + $0x60] sm:$0xff] %v417
      %436 = vst [vmem:[#allocation3 + $0x68] sm:$0xff] %v418
      %437 = vst.msk [vmem:[#allocation3 + $0x70] sm:$0xff] %vm367, %v403
      %438 = vst [vmem:[#allocation3 + $0x78] sm:$0xff] %v419
      %439 = vst [vmem:[#allocation3 + $0x80] sm:$0xff] %v420
      %440 = vst [vmem:[#allocation3 + $0x88] sm:$0xff] %v421
      %441 = vst [vmem:[#allocation3 + $0x90] sm:$0xff] %v422
      %442 = vst.msk [vmem:[#allocation3 + $0x98] sm:$0xff] %vm367, %v413
      %v443 = vld [vmem:[#allocation2] sm:$0xff]
      %v444 = vld [vmem:[#allocation2 + $0x8] sm:$0xff]
      %v445 = vld [vmem:[#allocation2 + $0x10] sm:$0xff]
      %v446 = vld [vmem:[#allocation2 + $0x18] sm:$0xff]
      %v447 = vld [vmem:[#allocation2 + $0x20] sm:$0xff]
      %v448 = vld [vmem:[#allocation2 + $0x30] sm:$0xff]
      %v449 = vld [vmem:[#allocation2 + $0x38] sm:$0xff]
      %v450 = vld [vmem:[#allocation2 + $0x40] sm:$0xff]
      %v451 = vld [vmem:[#allocation2 + $0x48] sm:$0xff]
      %v452 = vld [vmem:[#allocation2 + $0x50] sm:$0xff]
      %463 = vrot.lane.b32.xlu0 %v443, 126
      %v464 = vpop.permute.xlu0 %463
      %465 = vrot.lane.b32.xlu0 %v444, 126
      %v466 = vpop.permute.xlu0 %465
      %467 = vrot.lane.b32.xlu0 %v445, 126
      %v468 = vpop.permute.xlu0 %467
      %469 = vrot.lane.b32.xlu0 %v446, 126
      %v470 = vpop.permute.xlu0 %469
      %471 = vrot.lane.b32.xlu0 %v447, 126
      %v472 = vpop.permute.xlu0 %471
      %473 = vrot.lane.b32.xlu0 %v448, 126
      %v474 = vpop.permute.xlu0 %473
      %475 = vrot.lane.b32.xlu0 %v449, 126
      %v476 = vpop.permute.xlu0 %475
      %477 = vrot.lane.b32.xlu0 %v450, 126
      %v478 = vpop.permute.xlu0 %477
      %479 = vrot.lane.b32.xlu0 %v451, 126
      %v480 = vpop.permute.xlu0 %479
      %481 = vrot.lane.b32.xlu0 %v452, 126
      %v482 = vpop.permute.xlu0 %481
      %vm483 = vcmask 1031168
      %v484 = vsel %vm483, %v464, %v466
      %v485 = vsel %vm483, %v466, %v468
      %v486 = vsel %vm483, %v468, %v470
      %v487 = vsel %vm483, %v470, %v472
      %v488 = vsel %vm483, %v474, %v476
      %v489 = vsel %vm483, %v476, %v478
      %v490 = vsel %vm483, %v478, %v480
      %v491 = vsel %vm483, %v480, %v482
      %502 = vst [vmem:[#allocation3 + $0xa0] sm:$0xff] %v484
      %503 = vst [vmem:[#allocation3 + $0xa8] sm:$0xff] %v485
      %504 = vst [vmem:[#allocation3 + $0xb0] sm:$0xff] %v486
      %505 = vst [vmem:[#allocation3 + $0xb8] sm:$0xff] %v487
      %506 = vst.msk [vmem:[#allocation3 + $0xc0] sm:$0xff] %vm367, %v472
      %507 = vst [vmem:[#allocation3 + $0xc8] sm:$0xff] %v488
      %508 = vst [vmem:[#allocation3 + $0xd0] sm:$0xff] %v489
      %509 = vst [vmem:[#allocation3 + $0xd8] sm:$0xff] %v490
      %510 = vst [vmem:[#allocation3 + $0xe0] sm:$0xff] %v491
      %511 = vst.msk [vmem:[#allocation3 + $0xe8] sm:$0xff] %vm367, %v482
      %v512 = vld [vmem:[#allocation2] sm:$0xff]
      %v513 = vld [vmem:[#allocation2 + $0x8] sm:$0xff]
      %v514 = vld [vmem:[#allocation2 + $0x10] sm:$0xff]
      %v515 = vld [vmem:[#allocation2 + $0x18] sm:$0xff]
      %v516 = vld [vmem:[#allocation2 + $0x20] sm:$0xff]
      %v517 = vld [vmem:[#allocation2 + $0x30] sm:$0xff]
      %v518 = vld [vmem:[#allocation2 + $0x38] sm:$0xff]
      %v519 = vld [vmem:[#allocation2 + $0x40] sm:$0xff]
      %v520 = vld [vmem:[#allocation2 + $0x48] sm:$0xff]
      %v521 = vld [vmem:[#allocation2 + $0x50] sm:$0xff]
      %532 = vrot.lane.b32.xlu0 %v512, 110
      %v533 = vpop.permute.xlu0 %532
      %534 = vrot.lane.b32.xlu0 %v513, 110
      %v535 = vpop.permute.xlu0 %534
      %536 = vrot.lane.b32.xlu0 %v514, 110
      %v537 = vpop.permute.xlu0 %536
      %538 = vrot.lane.b32.xlu0 %v515, 110
      %v539 = vpop.permute.xlu0 %538
      %540 = vrot.lane.b32.xlu0 %v516, 110
      %v541 = vpop.permute.xlu0 %540
      %542 = vrot.lane.b32.xlu0 %v517, 110
      %v543 = vpop.permute.xlu0 %542
      %544 = vrot.lane.b32.xlu0 %v518, 110
      %v545 = vpop.permute.xlu0 %544
      %546 = vrot.lane.b32.xlu0 %v519, 110
      %v547 = vpop.permute.xlu0 %546
      %548 = vrot.lane.b32.xlu0 %v520, 110
      %v549 = vpop.permute.xlu0 %548
      %550 = vrot.lane.b32.xlu0 %v521, 110
      %v551 = vpop.permute.xlu0 %550
      %vm552 = vcmask 900096
      %v553 = vsel %vm552, %v533, %v535
      %v554 = vsel %vm552, %v535, %v537
      %v555 = vsel %vm552, %v537, %v539
      %v556 = vsel %vm552, %v539, %v541
      %v557 = vsel %vm552, %v543, %v545
      %v558 = vsel %vm552, %v545, %v547
      %v559 = vsel %vm552, %v547, %v549
      %v560 = vsel %vm552, %v549, %v551
      %571 = vst [vmem:[#allocation3 + $0xf0] sm:$0xff] %v553
      %572 = vst [vmem:[#allocation3 + $0xf8] sm:$0xff] %v554
      %573 = vst [vmem:[#allocation3 + $0x100] sm:$0xff] %v555
      %574 = vst [vmem:[#allocation3 + $0x108] sm:$0xff] %v556
      %575 = vst.msk [vmem:[#allocation3 + $0x110] sm:$0xff] %vm367, %v541
      %576 = vst [vmem:[#allocation3 + $0x118] sm:$0xff] %v557
      %577 = vst [vmem:[#allocation3 + $0x120] sm:$0xff] %v558
      %578 = vst [vmem:[#allocation3 + $0x128] sm:$0xff] %v559
      %579 = vst [vmem:[#allocation3 + $0x130] sm:$0xff] %v560
      %580 = vst.msk [vmem:[#allocation3 + $0x138] sm:$0xff] %vm367, %v551
      %v581 = vld [vmem:[#allocation2] sm:$0xff]
      %v582 = vld [vmem:[#allocation2 + $0x8] sm:$0xff]
      %v583 = vld [vmem:[#allocation2 + $0x10] sm:$0xff]
      %v584 = vld [vmem:[#allocation2 + $0x18] sm:$0xff]
      %v585 = vld [vmem:[#allocation2 + $0x20] sm:$0xff]
      %v586 = vld [vmem:[#allocation2 + $0x30] sm:$0xff]
      %v587 = vld [vmem:[#allocation2 + $0x38] sm:$0xff]
      %v588 = vld [vmem:[#allocation2 + $0x40] sm:$0xff]
      %v589 = vld [vmem:[#allocation2 + $0x48] sm:$0xff]
      %v590 = vld [vmem:[#allocation2 + $0x50] sm:$0xff]
      %601 = vrot.lane.b32.xlu0 %v581, 109
      %v602 = vpop.permute.xlu0 %601
      %603 = vrot.lane.b32.xlu0 %v582, 109
      %v604 = vpop.permute.xlu0 %603
      %605 = vrot.lane.b32.xlu0 %v583, 109
      %v606 = vpop.permute.xlu0 %605
      %607 = vrot.lane.b32.xlu0 %v584, 109
      %v608 = vpop.permute.xlu0 %607
      %609 = vrot.lane.b32.xlu0 %v585, 109
      %v610 = vpop.permute.xlu0 %609
      %611 = vrot.lane.b32.xlu0 %v586, 109
      %v612 = vpop.permute.xlu0 %611
      %613 = vrot.lane.b32.xlu0 %v587, 109
      %v614 = vpop.permute.xlu0 %613
      %615 = vrot.lane.b32.xlu0 %v588, 109
      %v616 = vpop.permute.xlu0 %615
      %617 = vrot.lane.b32.xlu0 %v589, 109
      %v618 = vpop.permute.xlu0 %617
      %619 = vrot.lane.b32.xlu0 %v590, 109
      %v620 = vpop.permute.xlu0 %619
      %vm621 = vcmask 891904
      %v622 = vsel %vm621, %v602, %v604
      %v623 = vsel %vm621, %v604, %v606
      %v624 = vsel %vm621, %v606, %v608
      %v625 = vsel %vm621, %v608, %v610
      %v626 = vsel %vm621, %v612, %v614
      %v627 = vsel %vm621, %v614, %v616
      %v628 = vsel %vm621, %v616, %v618
      %v629 = vsel %vm621, %v618, %v620
      %640 = vst [vmem:[#allocation3 + $0x140] sm:$0xff] %v622
      %641 = vst [vmem:[#allocation3 + $0x148] sm:$0xff] %v623
      %642 = vst [vmem:[#allocation3 + $0x150] sm:$0xff] %v624
      %643 = vst [vmem:[#allocation3 + $0x158] sm:$0xff] %v625
      %644 = vst.msk [vmem:[#allocation3 + $0x160] sm:$0xff] %vm367, %v610
      %645 = vst [vmem:[#allocation3 + $0x168] sm:$0xff] %v626
      %646 = vst [vmem:[#allocation3 + $0x170] sm:$0xff] %v627
      %647 = vst [vmem:[#allocation3 + $0x178] sm:$0xff] %v628
      %648 = vst [vmem:[#allocation3 + $0x180] sm:$0xff] %v629
      %649 = vst.msk [vmem:[#allocation3 + $0x188] sm:$0xff] %vm367, %v620
      %v650 = vld [vmem:[#allocation2] sm:$0xff]
      %v651 = vld [vmem:[#allocation2 + $0x8] sm:$0xff]
      %v652 = vld [vmem:[#allocation2 + $0x10] sm:$0xff]
      %v653 = vld [vmem:[#allocation2 + $0x18] sm:$0xff]
      %v654 = vld [vmem:[#allocation2 + $0x20] sm:$0xff]
      %v655 = vld [vmem:[#allocation2 + $0x30] sm:$0xff]
      %v656 = vld [vmem:[#allocation2 + $0x38] sm:$0xff]
      %v657 = vld [vmem:[#allocation2 + $0x40] sm:$0xff]
      %v658 = vld [vmem:[#allocation2 + $0x48] sm:$0xff]
      %v659 = vld [vmem:[#allocation2 + $0x50] sm:$0xff]
      %670 = vrot.lane.b32.xlu0 %v650, 108
      %v671 = vpop.permute.xlu0 %670
      %672 = vrot.lane.b32.xlu0 %v651, 108
      %v673 = vpop.permute.xlu0 %672
      %674 = vrot.lane.b32.xlu0 %v652, 108
      %v675 = vpop.permute.xlu0 %674
      %676 = vrot.lane.b32.xlu0 %v653, 108
      %v677 = vpop.permute.xlu0 %676
      %678 = vrot.lane.b32.xlu0 %v654, 108
      %v679 = vpop.permute.xlu0 %678
      %680 = vrot.lane.b32.xlu0 %v655, 108
      %v681 = vpop.permute.xlu0 %680
      %682 = vrot.lane.b32.xlu0 %v656, 108
      %v683 = vpop.permute.xlu0 %682
      %684 = vrot.lane.b32.xlu0 %v657, 108
      %v685 = vpop.permute.xlu0 %684
      %686 = vrot.lane.b32.xlu0 %v658, 108
      %v687 = vpop.permute.xlu0 %686
      %688 = vrot.lane.b32.xlu0 %v659, 108
      %v689 = vpop.permute.xlu0 %688
      %vm690 = vcmask 883712
      %v691 = vsel %vm690, %v671, %v673
      %v692 = vsel %vm690, %v673, %v675
      %v693 = vsel %vm690, %v675, %v677
      %v694 = vsel %vm690, %v677, %v679
      %v695 = vsel %vm690, %v681, %v683
      %v696 = vsel %vm690, %v683, %v685
      %v697 = vsel %vm690, %v685, %v687
      %v698 = vsel %vm690, %v687, %v689
      %709 = vst [vmem:[#allocation3 + $0x190] sm:$0xff] %v691
      %710 = vst [vmem:[#allocation3 + $0x198] sm:$0xff] %v692
      %711 = vst [vmem:[#allocation3 + $0x1a0] sm:$0xff] %v693
      %712 = vst [vmem:[#allocation3 + $0x1a8] sm:$0xff] %v694
      %713 = vst.msk [vmem:[#allocation3 + $0x1b0] sm:$0xff] %vm367, %v679
      %714 = vst [vmem:[#allocation3 + $0x1b8] sm:$0xff] %v695
      %715 = vst [vmem:[#allocation3 + $0x1c0] sm:$0xff] %v696
      %716 = vst [vmem:[#allocation3 + $0x1c8] sm:$0xff] %v697
      %717 = vst [vmem:[#allocation3 + $0x1d0] sm:$0xff] %v698
      %718 = vst.msk [vmem:[#allocation3 + $0x1d8] sm:$0xff] %vm367, %v689
      %v719 = vld [vmem:[#allocation2] sm:$0xff]
      %v720 = vld [vmem:[#allocation2 + $0x8] sm:$0xff]
      %v721 = vld [vmem:[#allocation2 + $0x10] sm:$0xff]
      %v722 = vld [vmem:[#allocation2 + $0x18] sm:$0xff]
      %v723 = vld [vmem:[#allocation2 + $0x20] sm:$0xff]
      %v724 = vld [vmem:[#allocation2 + $0x28] sm:$0xff]
      %v725 = vld [vmem:[#allocation2 + $0x30] sm:$0xff]
      %v726 = vld [vmem:[#allocation2 + $0x38] sm:$0xff]
      %v727 = vld [vmem:[#allocation2 + $0x40] sm:$0xff]
      %v728 = vld [vmem:[#allocation2 + $0x48] sm:$0xff]
      %v729 = vld [vmem:[#allocation2 + $0x50] sm:$0xff]
      %v730 = vld [vmem:[#allocation2 + $0x58] sm:$0xff]
      %743 = vrot.lane.b32.xlu0 %v719, 92
      %v744 = vpop.permute.xlu0 %743
      %745 = vrot.lane.b32.xlu0 %v720, 92
      %v746 = vpop.permute.xlu0 %745
      %747 = vrot.lane.b32.xlu0 %v721, 92
      %v748 = vpop.permute.xlu0 %747
      %749 = vrot.lane.b32.xlu0 %v722, 92
      %v750 = vpop.permute.xlu0 %749
      %751 = vrot.lane.b32.xlu0 %v723, 92
      %v752 = vpop.permute.xlu0 %751
      %753 = vrot.lane.b32.xlu0 %v724, 92
      %v754 = vpop.permute.xlu0 %753
      %755 = vrot.lane.b32.xlu0 %v725, 92
      %v756 = vpop.permute.xlu0 %755
      %757 = vrot.lane.b32.xlu0 %v726, 92
      %v758 = vpop.permute.xlu0 %757
      %759 = vrot.lane.b32.xlu0 %v727, 92
      %v760 = vpop.permute.xlu0 %759
      %761 = vrot.lane.b32.xlu0 %v728, 92
      %v762 = vpop.permute.xlu0 %761
      %763 = vrot.lane.b32.xlu0 %v729, 92
      %v764 = vpop.permute.xlu0 %763
      %765 = vrot.lane.b32.xlu0 %v730, 92
      %v766 = vpop.permute.xlu0 %765
      %vm767 = vcmask 752640
      %v768 = vsel %vm767, %v744, %v746
      %v769 = vsel %vm767, %v746, %v748
      %v770 = vsel %vm767, %v748, %v750
      %v771 = vsel %vm767, %v750, %v752
      %v772 = vsel %vm767, %v752, %v754
      %v773 = vsel %vm767, %v756, %v758
      %v774 = vsel %vm767, %v758, %v760
      %v775 = vsel %vm767, %v760, %v762
      %v776 = vsel %vm767, %v762, %v764
      %v777 = vsel %vm767, %v764, %v766
      %788 = vst [vmem:[#allocation3 + $0x1e0] sm:$0xff] %v768
      %789 = vst [vmem:[#allocation3 + $0x1e8] sm:$0xff] %v769
      %790 = vst [vmem:[#allocation3 + $0x1f0] sm:$0xff] %v770
      %791 = vst [vmem:[#allocation3 + $0x1f8] sm:$0xff] %v771
      %792 = vst.msk [vmem:[#allocation3 + $0x200] sm:$0xff] %vm367, %v772
      %793 = vst [vmem:[#allocation3 + $0x208] sm:$0xff] %v773
      %794 = vst [vmem:[#allocation3 + $0x210] sm:$0xff] %v774
      %795 = vst [vmem:[#allocation3 + $0x218] sm:$0xff] %v775
      %796 = vst [vmem:[#allocation3 + $0x220] sm:$0xff] %v776
      %797 = vst.msk [vmem:[#allocation3 + $0x228] sm:$0xff] %vm367, %v777
      %v798 = vld [vmem:[#allocation2] sm:$0xff]
      %v799 = vld [vmem:[#allocation2 + $0x8] sm:$0xff]
      %v800 = vld [vmem:[#allocation2 + $0x10] sm:$0xff]
      %v801 = vld [vmem:[#allocation2 + $0x18] sm:$0xff]
      %v802 = vld [vmem:[#allocation2 + $0x20] sm:$0xff]
      %v803 = vld [vmem:[#allocation2 + $0x28] sm:$0xff]
      %v804 = vld [vmem:[#allocation2 + $0x30] sm:$0xff]
      %v805 = vld [vmem:[#allocation2 + $0x38] sm:$0xff]
      %v806 = vld [vmem:[#allocation2 + $0x40] sm:$0xff]
      %v807 = vld [vmem:[#allocation2 + $0x48] sm:$0xff]
      %v808 = vld [vmem:[#allocation2 + $0x50] sm:$0xff]
      %v809 = vld [vmem:[#allocation2 + $0x58] sm:$0xff]
      %822 = vrot.lane.b32.xlu0 %v798, 91
      %v823 = vpop.permute.xlu0 %822
      %824 = vrot.lane.b32.xlu0 %v799, 91
      %v825 = vpop.permute.xlu0 %824
      %826 = vrot.lane.b32.xlu0 %v800, 91
      %v827 = vpop.permute.xlu0 %826
      %828 = vrot.lane.b32.xlu0 %v801, 91
      %v829 = vpop.permute.xlu0 %828
      %830 = vrot.lane.b32.xlu0 %v802, 91
      %v831 = vpop.permute.xlu0 %830
      %832 = vrot.lane.b32.xlu0 %v803, 91
      %v833 = vpop.permute.xlu0 %832
      %834 = vrot.lane.b32.xlu0 %v804, 91
      %v835 = vpop.permute.xlu0 %834
      %836 = vrot.lane.b32.xlu0 %v805, 91
      %v837 = vpop.permute.xlu0 %836
      %838 = vrot.lane.b32.xlu0 %v806, 91
      %v839 = vpop.permute.xlu0 %838
      %840 = vrot.lane.b32.xlu0 %v807, 91
      %v841 = vpop.permute.xlu0 %840
      %842 = vrot.lane.b32.xlu0 %v808, 91
      %v843 = vpop.permute.xlu0 %842
      %844 = vrot.lane.b32.xlu0 %v809, 91
      %v845 = vpop.permute.xlu0 %844
      %vm846 = vcmask 744448
      %v847 = vsel %vm846, %v823, %v825
      %v848 = vsel %vm846, %v825, %v827
      %v849 = vsel %vm846, %v827, %v829
      %v850 = vsel %vm846, %v829, %v831
      %v851 = vsel %vm846, %v831, %v833
      %v852 = vsel %vm846, %v835, %v837
      %v853 = vsel %vm846, %v837, %v839
      %v854 = vsel %vm846, %v839, %v841
      %v855 = vsel %vm846, %v841, %v843
      %v856 = vsel %vm846, %v843, %v845
      %867 = vst [vmem:[#allocation3 + $0x230] sm:$0xff] %v847
      %868 = vst [vmem:[#allocation3 + $0x238] sm:$0xff] %v848
      %869 = vst [vmem:[#allocation3 + $0x240] sm:$0xff] %v849
      %870 = vst [vmem:[#allocation3 + $0x248] sm:$0xff] %v850
      %871 = vst.msk [vmem:[#allocation3 + $0x250] sm:$0xff] %vm367, %v851
      %872 = vst [vmem:[#allocation3 + $0x258] sm:$0xff] %v852
      %873 = vst [vmem:[#allocation3 + $0x260] sm:$0xff] %v853
      %874 = vst [vmem:[#allocation3 + $0x268] sm:$0xff] %v854
      %875 = vst [vmem:[#allocation3 + $0x270] sm:$0xff] %v855
      %876 = vst.msk [vmem:[#allocation3 + $0x278] sm:$0xff] %vm367, %v856
      %v877 = vld [vmem:[#allocation2] sm:$0xff]
      %v878 = vld [vmem:[#allocation2 + $0x8] sm:$0xff]
      %v879 = vld [vmem:[#allocation2 + $0x10] sm:$0xff]
      %v880 = vld [vmem:[#allocation2 + $0x18] sm:$0xff]
      %v881 = vld [vmem:[#allocation2 + $0x20] sm:$0xff]
      %v882 = vld [vmem:[#allocation2 + $0x28] sm:$0xff]
      %v883 = vld [vmem:[#allocation2 + $0x30] sm:$0xff]
      %v884 = vld [vmem:[#allocation2 + $0x38] sm:$0xff]
      %v885 = vld [vmem:[#allocation2 + $0x40] sm:$0xff]
      %v886 = vld [vmem:[#allocation2 + $0x48] sm:$0xff]
      %v887 = vld [vmem:[#allocation2 + $0x50] sm:$0xff]
      %v888 = vld [vmem:[#allocation2 + $0x58] sm:$0xff]
      %901 = vrot.lane.b32.xlu0 %v877, 90
      %v902 = vpop.permute.xlu0 %901
      %903 = vrot.lane.b32.xlu0 %v878, 90
      %v904 = vpop.permute.xlu0 %903
      %905 = vrot.lane.b32.xlu0 %v879, 90
      %v906 = vpop.permute.xlu0 %905
      %907 = vrot.lane.b32.xlu0 %v880, 90
      %v908 = vpop.permute.xlu0 %907
      %909 = vrot.lane.b32.xlu0 %v881, 90
      %v910 = vpop.permute.xlu0 %909
      %911 = vrot.lane.b32.xlu0 %v882, 90
      %v912 = vpop.permute.xlu0 %911
      %913 = vrot.lane.b32.xlu0 %v883, 90
      %v914 = vpop.permute.xlu0 %913
      %915 = vrot.lane.b32.xlu0 %v884, 90
      %v916 = vpop.permute.xlu0 %915
      %917 = vrot.lane.b32.xlu0 %v885, 90
      %v918 = vpop.permute.xlu0 %917
      %919 = vrot.lane.b32.xlu0 %v886, 90
      %v920 = vpop.permute.xlu0 %919
      %921 = vrot.lane.b32.xlu0 %v887, 90
      %v922 = vpop.permute.xlu0 %921
      %923 = vrot.lane.b32.xlu0 %v888, 90
      %v924 = vpop.permute.xlu0 %923
      %vm925 = vcmask 736256
      %v926 = vsel %vm925, %v902, %v904
      %v927 = vsel %vm925, %v904, %v906
      %v928 = vsel %vm925, %v906, %v908
      %v929 = vsel %vm925, %v908, %v910
      %v930 = vsel %vm925, %v910, %v912
      %v931 = vsel %vm925, %v914, %v916
      %v932 = vsel %vm925, %v916, %v918
      %v933 = vsel %vm925, %v918, %v920
      %v934 = vsel %vm925, %v920, %v922
      %v935 = vsel %vm925, %v922, %v924
      %946 = vst [vmem:[#allocation3 + $0x280] sm:$0xff] %v926
      %947 = vst [vmem:[#allocation3 + $0x288] sm:$0xff] %v927
      %948 = vst [vmem:[#allocation3 + $0x290] sm:$0xff] %v928
      %949 = vst [vmem:[#allocation3 + $0x298] sm:$0xff] %v929
      %950 = vst.msk [vmem:[#allocation3 + $0x2a0] sm:$0xff] %vm367, %v930
      %951 = vst [vmem:[#allocation3 + $0x2a8] sm:$0xff] %v931
      %952 = vst [vmem:[#allocation3 + $0x2b0] sm:$0xff] %v932
      %953 = vst [vmem:[#allocation3 + $0x2b8] sm:$0xff] %v933
      %954 = vst [vmem:[#allocation3 + $0x2c0] sm:$0xff] %v934
      %955 = vst.msk [vmem:[#allocation3 + $0x2c8] sm:$0xff] %vm367, %v935
      %v956 = vld [vmem:[%s2] sm:$0xff]
      %v957 = vld [vmem:[%s2 + $0x8] sm:$0xf]
      %v958 = vld [vmem:[%s2 + $0xc] sm:$0xff]
      %v959 = vld [vmem:[%s2 + $0x14] sm:$0xf]
      %v960 = vld [vmem:[%s2 + $0x18] sm:$0xff]
      %v961 = vld [vmem:[%s2 + $0x20] sm:$0xf]
      %v962 = vld [vmem:[%s2 + $0x24] sm:$0xff]
      %v963 = vld [vmem:[%s2 + $0x2c] sm:$0xf]
      %v964 = vld [vmem:[#allocation3] sm:$0xff]
      %v965 = vld [vmem:[#allocation3 + $0x8] sm:$0xff]
      %v966 = vld [vmem:[#allocation3 + $0x10] sm:$0xff]
      %v967 = vld [vmem:[#allocation3 + $0x18] sm:$0xff]
      %v968 = vld [vmem:[#allocation3 + $0x20] sm:$0xff]
      %v969 = vld [vmem:[#allocation3 + $0x28] sm:$0xff]
      %v970 = vld [vmem:[#allocation3 + $0x30] sm:$0xff]
      %v971 = vld [vmem:[#allocation3 + $0x38] sm:$0xff]
      %v972 = vld [vmem:[#allocation3 + $0x40] sm:$0xff]
      %v973 = vld [vmem:[#allocation3 + $0x48] sm:$0xff]
      %v974 = vld [vmem:[#allocation3 + $0x50] sm:$0xff]
      %v975 = vld [vmem:[#allocation3 + $0x58] sm:$0xff]
      %v976 = vld [vmem:[#allocation3 + $0x60] sm:$0xff]
      %v977 = vld [vmem:[#allocation3 + $0x68] sm:$0xff]
      %v978 = vld [vmem:[#allocation3 + $0x70] sm:$0xff]
      %v979 = vld [vmem:[#allocation3 + $0x78] sm:$0xff]
      %v980 = vld [vmem:[#allocation3 + $0x80] sm:$0xff]
      %v981 = vld [vmem:[#allocation3 + $0x88] sm:$0xff]
      %v982 = vld [vmem:[#allocation3 + $0x90] sm:$0xff]
      %v983 = vld [vmem:[#allocation3 + $0x98] sm:$0xff]
      %v984 = vld [vmem:[#allocation3 + $0xa0] sm:$0xff]
      %v985 = vld [vmem:[#allocation3 + $0xa8] sm:$0xff]
      %v986 = vld [vmem:[#allocation3 + $0xb0] sm:$0xff]
      %v987 = vld [vmem:[#allocation3 + $0xb8] sm:$0xff]
      %v988 = vld [vmem:[#allocation3 + $0xc0] sm:$0xff]
      %v989 = vld [vmem:[#allocation3 + $0xc8] sm:$0xff]
      %v990 = vld [vmem:[#allocation3 + $0xd0] sm:$0xff]
      %v991 = vld [vmem:[#allocation3 + $0xd8] sm:$0xff]
      %v992 = vld [vmem:[#allocation3 + $0xe0] sm:$0xff]
      %v993 = vld [vmem:[#allocation3 + $0xe8] sm:$0xff]
      %v994 = vld [vmem:[#allocation3 + $0xf0] sm:$0xff]
      %v995 = vld [vmem:[#allocation3 + $0xf8] sm:$0xff]
      %v996 = vld [vmem:[#allocation3 + $0x100] sm:$0xff]
      %v997 = vld [vmem:[#allocation3 + $0x108] sm:$0xff]
      %v998 = vld [vmem:[#allocation3 + $0x110] sm:$0xff]
      %v999 = vld [vmem:[#allocation3 + $0x118] sm:$0xff]
      %v1000 = vld [vmem:[#allocation3 + $0x120] sm:$0xff]
      %v1001 = vld [vmem:[#allocation3 + $0x128] sm:$0xff]
      %v1002 = vld [vmem:[#allocation3 + $0x130] sm:$0xff]
      %v1003 = vld [vmem:[#allocation3 + $0x138] sm:$0xff]
      %v1004 = vld [vmem:[#allocation3 + $0x140] sm:$0xff]
      %v1005 = vld [vmem:[#allocation3 + $0x148] sm:$0xff]
      %v1006 = vld [vmem:[#allocation3 + $0x150] sm:$0xff]
      %v1007 = vld [vmem:[#allocation3 + $0x158] sm:$0xff]
      %v1008 = vld [vmem:[#allocation3 + $0x160] sm:$0xff]
      %v1009 = vld [vmem:[#allocation3 + $0x168] sm:$0xff]
      %v1010 = vld [vmem:[#allocation3 + $0x170] sm:$0xff]
      %v1011 = vld [vmem:[#allocation3 + $0x178] sm:$0xff]
      %v1012 = vld [vmem:[#allocation3 + $0x180] sm:$0xff]
      %v1013 = vld [vmem:[#allocation3 + $0x188] sm:$0xff]
      %v1014 = vld [vmem:[#allocation3 + $0x190] sm:$0xff]
      %v1015 = vld [vmem:[#allocation3 + $0x198] sm:$0xff]
      %v1016 = vld [vmem:[#allocation3 + $0x1a0] sm:$0xff]
      %v1017 = vld [vmem:[#allocation3 + $0x1a8] sm:$0xff]
      %v1018 = vld [vmem:[#allocation3 + $0x1b0] sm:$0xff]
      %v1019 = vld [vmem:[#allocation3 + $0x1b8] sm:$0xff]
      %v1020 = vld [vmem:[#allocation3 + $0x1c0] sm:$0xff]
      %v1021 = vld [vmem:[#allocation3 + $0x1c8] sm:$0xff]
      %v1022 = vld [vmem:[#allocation3 + $0x1d0] sm:$0xff]
      %v1023 = vld [vmem:[#allocation3 + $0x1d8] sm:$0xff]
      %v1024 = vld [vmem:[#allocation3 + $0x1e0] sm:$0xff]
      %v1025 = vld [vmem:[#allocation3 + $0x1e8] sm:$0xff]
      %v1026 = vld [vmem:[#allocation3 + $0x1f0] sm:$0xff]
      %v1027 = vld [vmem:[#allocation3 + $0x1f8] sm:$0xff]
      %v1028 = vld [vmem:[#allocation3 + $0x200] sm:$0xff]
      %v1029 = vld [vmem:[#allocation3 + $0x208] sm:$0xff]
      %v1030 = vld [vmem:[#allocation3 + $0x210] sm:$0xff]
      %v1031 = vld [vmem:[#allocation3 + $0x218] sm:$0xff]
      %v1032 = vld [vmem:[#allocation3 + $0x220] sm:$0xff]
      %v1033 = vld [vmem:[#allocation3 + $0x228] sm:$0xff]
      %v1034 = vld [vmem:[#allocation3 + $0x230] sm:$0xff]
      %v1035 = vld [vmem:[#allocation3 + $0x238] sm:$0xff]
      %v1036 = vld [vmem:[#allocation3 + $0x240] sm:$0xff]
      %v1037 = vld [vmem:[#allocation3 + $0x248] sm:$0xff]
      %v1038 = vld [vmem:[#allocation3 + $0x250] sm:$0xff]
      %v1039 = vld [vmem:[#allocation3 + $0x258] sm:$0xff]
      %v1040 = vld [vmem:[#allocation3 + $0x260] sm:$0xff]
      %v1041 = vld [vmem:[#allocation3 + $0x268] sm:$0xff]
      %v1042 = vld [vmem:[#allocation3 + $0x270] sm:$0xff]
      %v1043 = vld [vmem:[#allocation3 + $0x278] sm:$0xff]
      %v1044 = vld [vmem:[#allocation3 + $0x280] sm:$0xff]
      %v1045 = vld [vmem:[#allocation3 + $0x288] sm:$0xff]
      %v1046 = vld [vmem:[#allocation3 + $0x290] sm:$0xff]
      %v1047 = vld [vmem:[#allocation3 + $0x298] sm:$0xff]
      %v1048 = vld [vmem:[#allocation3 + $0x2a0] sm:$0xff]
      %v1049 = vld [vmem:[#allocation3 + $0x2a8] sm:$0xff]
      %v1050 = vld [vmem:[#allocation3 + $0x2b0] sm:$0xff]
      %v1051 = vld [vmem:[#allocation3 + $0x2b8] sm:$0xff]
      %v1052 = vld [vmem:[#allocation3 + $0x2c0] sm:$0xff]
      %v1053 = vld [vmem:[#allocation3 + $0x2c8] sm:$0xff]
      %v1054 = vld [vmem:[%s3] sm:$0xff]
      %v1055 = vld [vmem:[%s3 + $0x8] sm:$0xff]
      %v1056 = vld [vmem:[%s3 + $0x10] sm:$0xff]
      %v1057 = vld [vmem:[%s3 + $0x18] sm:$0xff]
      %1059 = vset.pattern.permute.xlu0 0
      %1060 = vperm.xlu0 %1059, %v1054
      %v1061 = vpop.permute.xlu0 %1060
      %1064 = vset.pattern.permute.xlu0 0
      %1065 = vperm.xlu0 %1064, %v1055
      %v1066 = vpop.permute.xlu0 %1065
      %1069 = vset.pattern.permute.xlu0 0
      %1070 = vperm.xlu0 %1069, %v1056
      %v1071 = vpop.permute.xlu0 %1070
      %1074 = vset.pattern.permute.xlu0 0
      %1075 = vperm.xlu0 %1074, %v1057
      %v1076 = vpop.permute.xlu0 %1075
      %v1086 = vunpack.c.l.b16 %v956
      %v1087 = vunpack.c.h.b16 %v956
      %v1088 = vunpack.c.l.b16 %v957
      %v1089 = vunpack.c.l.b16 %v958
      %v1090 = vunpack.c.h.b16 %v958
      %v1091 = vunpack.c.l.b16 %v959
      %v1092 = vunpack.c.l.b16 %v960
      %v1093 = vunpack.c.h.b16 %v960
      %v1094 = vunpack.c.l.b16 %v961
      %v1095 = vunpack.c.l.b16 %v962
      %v1096 = vunpack.c.h.b16 %v962
      %v1097 = vunpack.c.l.b16 %v963
      %v1098 = vpack.c.b16 %v1089, %v1086
      %v1099 = vpack.c.b16 %v1090, %v1087
      %v1100 = vpack.c.b16 %v1091, %v1088
      %v1101 = vpack.c.b16 %v1095, %v1092
      %v1102 = vpack.c.b16 %v1096, %v1093
      %v1103 = vpack.c.b16 %v1097, %v1094
      %vm1108 = vcmask 261120
      %v1110 = vsel %vm1108, %v1100, 0
      %v1113 = vsel %vm1108, %v1103, 0
      %1115 = vmatprep.subr.bf16.mxu0 %v965
      %1116 = vmatpush1.bf16.msra.mxu0 %v964
      %1117 = vmatprep.subr.bf16.mxu0 %v970
      %1118 = vmatpush1.bf16.msra.mxu0 %v969
      %1119 = vmatprep.subr.bf16.mxu0 %v975
      %1120 = vmatpush1.bf16.msra.mxu0 %v974
      %1121 = vmatprep.subr.bf16.mxu0 %v980
      %1122 = vmatpush1.bf16.msra.mxu0 %v979
      %1123 = vmatprep.subr.bf16.mxu0 %v985
      %1124 = vmatpush1.bf16.msra.mxu0 %v984
      %1125 = vmatprep.subr.bf16.mxu0 %v990
      %1126 = vmatpush1.bf16.msra.mxu0 %v989
      %1127 = vmatprep.subr.bf16.mxu0 %v995
      %1128 = vmatpush1.bf16.msra.mxu0 %v994
      %1129 = vmatprep.subr.bf16.mxu0 %v1000
      %1130 = vmatpush1.bf16.msra.mxu0 %v999
      %1131 = vmatprep.subr.bf16.mxu0 %v1005
      %1132 = vmatpush1.bf16.msra.mxu0 %v1004
      %1133 = vmatprep.subr.bf16.mxu0 %v1010
      %1134 = vmatpush1.bf16.msra.mxu0 %v1009
      %1135 = vmatprep.subr.bf16.mxu0 %v1015
      %1136 = vmatpush1.bf16.msra.mxu0 %v1014
      %1137 = vmatprep.subr.bf16.mxu0 %v1020
      %1138 = vmatpush1.bf16.msra.mxu0 %v1019
      %1139 = vmatprep.subr.bf16.mxu0 %v1025
      %1140 = vmatpush1.bf16.msra.mxu0 %v1024
      %1141 = vmatprep.subr.bf16.mxu0 %v1030
      %1142 = vmatpush1.bf16.msra.mxu0 %v1029
      %1143 = vmatprep.subr.bf16.mxu0 %v1035
      %1144 = vmatpush1.bf16.msra.mxu0 %v1034
      %1145 = vmatprep.subr.bf16.mxu0 %v1040
      %1146 = vmatpush1.bf16.msra.mxu0 %v1039
      %1147 = vmatprep.mubr.bf16.mxu0 %v1099
      %1148 = vmatmul.mubr.bf16.gmra.mrb[0].mxu0 %v1098
      %v1149 = vpop.f32.mrb[0].mxu0
      %v1150 = vadd.f32 %v1061, %v1149
      %v1151 = vpop.f32.mrb[0].mxu0
      %v1152 = vadd.f32 %v1061, %v1151
      %v1153 = vpop.f32.mrb[0].mxu0
      %v1154 = vadd.f32 %v1066, %v1153
      %v1155 = vpop.f32.mrb[0].mxu0
      %v1156 = vadd.f32 %v1066, %v1155
      %1157 = vmatprep.mubr.bf16.mxu0 %v1102
      %1158 = vmatmul.mubr.bf16.gmra.mrb[0].mxu0 %v1101
      %v1159 = vpop.f32.mrb[0].mxu0
      %v1160 = vadd.f32 %v1071, %v1159
      %v1161 = vpop.f32.mrb[0].mxu0
      %v1162 = vadd.f32 %v1071, %v1161
      %v1163 = vpop.f32.mrb[0].mxu0
      %v1164 = vadd.f32 %v1076, %v1163
      %v1165 = vpop.f32.mrb[0].mxu0
      %v1166 = vadd.f32 %v1076, %v1165
      %1167 = vdwg.mxu0
      %1168 = vmatprep.subr.bf16.mxu0 %v1045
      %1169 = vmatpush1.bf16.msra.mxu0 %v1044
      %1170 = vmatprep.subr.bf16.mxu0 %v1050
      %1171 = vmatpush1.bf16.msra.mxu0 %v1049
      %1172 = vmatprep.subr.bf16.mxu0 0
      %1173 = vmatpush1.bf16.msra.mxu0 0
      %1174 = vmatprep.subr.bf16.mxu0 0
      %1175 = vmatpush1.bf16.msra.mxu0 0
      %1176 = vmatprep.subr.bf16.mxu0 0
      %1177 = vmatpush1.bf16.msra.mxu0 0
      %1178 = vmatprep.subr.bf16.mxu0 0
      %1179 = vmatpush1.bf16.msra.mxu0 0
      %1180 = vmatprep.subr.bf16.mxu0 0
      %1181 = vmatpush1.bf16.msra.mxu0 0
      %1182 = vmatprep.subr.bf16.mxu0 0
      %1183 = vmatpush1.bf16.msra.mxu0 0
      %1184 = vmatprep.subr.bf16.mxu0 0
      %1185 = vmatpush1.bf16.msra.mxu0 0
      %1186 = vmatprep.subr.bf16.mxu0 0
      %1187 = vmatpush1.bf16.msra.mxu0 0
      %1188 = vmatprep.subr.bf16.mxu0 0
      %1189 = vmatpush1.bf16.msra.mxu0 0
      %1190 = vmatprep.subr.bf16.mxu0 0
      %1191 = vmatpush1.bf16.msra.mxu0 0
      %1192 = vmatprep.subr.bf16.mxu0 0
      %1193 = vmatpush1.bf16.msra.mxu0 0
      %1194 = vmatprep.subr.bf16.mxu0 0
      %1195 = vmatpush1.bf16.msra.mxu0 0
      %1196 = vmatprep.subr.bf16.mxu0 0
      %1197 = vmatpush1.bf16.msra.mxu0 0
      %1198 = vmatprep.subr.bf16.mxu0 0
      %1199 = vmatpush1.bf16.msra.mxu0 0
      %1200 = vmatprep.mubr.bf16.mxu0 0
      %1201 = vmatmul.mubr.bf16.gmra.mrb[0].mxu0 %v1110
      %v1202 = vpop.f32.mrb[0].mxu0
      %v1203 = vadd.f32 %v1150, %v1202
      %v1204 = vpop.f32.mrb[0].mxu0
      %v1205 = vadd.f32 %v1152, %v1204
      %v1206 = vpop.f32.mrb[0].mxu0
      %v1207 = vadd.f32 %v1154, %v1206
      %v1208 = vpop.f32.mrb[0].mxu0
      %v1209 = vadd.f32 %v1156, %v1208
      %1210 = vmatprep.mubr.bf16.mxu0 0
      %1211 = vmatmul.mubr.bf16.gmra.mrb[0].mxu0 %v1113
      %v1212 = vpop.f32.mrb[0].mxu0
      %v1213 = vadd.f32 %v1160, %v1212
      %v1214 = vpop.f32.mrb[0].mxu0
      %v1215 = vadd.f32 %v1162, %v1214
      %v1216 = vpop.f32.mrb[0].mxu0
      %v1217 = vadd.f32 %v1164, %v1216
      %v1218 = vpop.f32.mrb[0].mxu0
      %v1219 = vadd.f32 %v1166, %v1218
      %1220 = vdwg.mxu0
      %1221 = vmatprep.subr.bf16.mxu0 %v967
      %1222 = vmatpush1.bf16.msra.mxu0 %v966
      %1223 = vmatprep.subr.bf16.mxu0 %v972
      %1224 = vmatpush1.bf16.msra.mxu0 %v971
      %1225 = vmatprep.subr.bf16.mxu0 %v977
      %1226 = vmatpush1.bf16.msra.mxu0 %v976
      %1227 = vmatprep.subr.bf16.mxu0 %v982
      %1228 = vmatpush1.bf16.msra.mxu0 %v981
      %1229 = vmatprep.subr.bf16.mxu0 %v987
      %1230 = vmatpush1.bf16.msra.mxu0 %v986
      %1231 = vmatprep.subr.bf16.mxu0 %v992
      %1232 = vmatpush1.bf16.msra.mxu0 %v991
      %1233 = vmatprep.subr.bf16.mxu0 %v997
      %1234 = vmatpush1.bf16.msra.mxu0 %v996
      %1235 = vmatprep.subr.bf16.mxu0 %v1002
      %1236 = vmatpush1.bf16.msra.mxu0 %v1001
      %1237 = vmatprep.subr.bf16.mxu0 %v1007
      %1238 = vmatpush1.bf16.msra.mxu0 %v1006
      %1239 = vmatprep.subr.bf16.mxu0 %v1012
      %1240 = vmatpush1.bf16.msra.mxu0 %v1011
      %1241 = vmatprep.subr.bf16.mxu0 %v1017
      %1242 = vmatpush1.bf16.msra.mxu0 %v1016
      %1243 = vmatprep.subr.bf16.mxu0 %v1022
      %1244 = vmatpush1.bf16.msra.mxu0 %v1021
      %1245 = vmatprep.subr.bf16.mxu0 %v1027
      %1246 = vmatpush1.bf16.msra.mxu0 %v1026
      %1247 = vmatprep.subr.bf16.mxu0 %v1032
      %1248 = vmatpush1.bf16.msra.mxu0 %v1031
      %1249 = vmatprep.subr.bf16.mxu0 %v1037
      %1250 = vmatpush1.bf16.msra.mxu0 %v1036
      %1251 = vmatprep.subr.bf16.mxu0 %v1042
      %1252 = vmatpush1.bf16.msra.mxu0 %v1041
      %1253 = vmatprep.mubr.bf16.mxu0 %v1099
      %1254 = vmatmul.mubr.bf16.gmra.mrb[0].mxu0 %v1098
      %v1255 = vpop.f32.mrb[0].mxu0
      %v1256 = vadd.f32 %v1061, %v1255
      %v1257 = vpop.f32.mrb[0].mxu0
      %v1258 = vadd.f32 %v1061, %v1257
      %v1259 = vpop.f32.mrb[0].mxu0
      %v1260 = vadd.f32 %v1066, %v1259
      %v1261 = vpop.f32.mrb[0].mxu0
      %v1262 = vadd.f32 %v1066, %v1261
      %1263 = vmatprep.mubr.bf16.mxu0 %v1102
      %1264 = vmatmul.mubr.bf16.gmra.mrb[0].mxu0 %v1101
      %v1265 = vpop.f32.mrb[0].mxu0
      %v1266 = vadd.f32 %v1071, %v1265
      %v1267 = vpop.f32.mrb[0].mxu0
      %v1268 = vadd.f32 %v1071, %v1267
      %v1269 = vpop.f32.mrb[0].mxu0
      %v1270 = vadd.f32 %v1076, %v1269
      %v1271 = vpop.f32.mrb[0].mxu0
      %v1272 = vadd.f32 %v1076, %v1271
      %1273 = vdwg.mxu0
      %1274 = vmatprep.subr.bf16.mxu0 %v1047
      %1275 = vmatpush1.bf16.msra.mxu0 %v1046
      %1276 = vmatprep.subr.bf16.mxu0 %v1052
      %1277 = vmatpush1.bf16.msra.mxu0 %v1051
      %1278 = vmatprep.subr.bf16.mxu0 0
      %1279 = vmatpush1.bf16.msra.mxu0 0
      %1280 = vmatprep.subr.bf16.mxu0 0
      %1281 = vmatpush1.bf16.msra.mxu0 0
      %1282 = vmatprep.subr.bf16.mxu0 0
      %1283 = vmatpush1.bf16.msra.mxu0 0
      %1284 = vmatprep.subr.bf16.mxu0 0
      %1285 = vmatpush1.bf16.msra.mxu0 0
      %1286 = vmatprep.subr.bf16.mxu0 0
      %1287 = vmatpush1.bf16.msra.mxu0 0
      %1288 = vmatprep.subr.bf16.mxu0 0
      %1289 = vmatpush1.bf16.msra.mxu0 0
      %1290 = vmatprep.subr.bf16.mxu0 0
      %1291 = vmatpush1.bf16.msra.mxu0 0
      %1292 = vmatprep.subr.bf16.mxu0 0
      %1293 = vmatpush1.bf16.msra.mxu0 0
      %1294 = vmatprep.subr.bf16.mxu0 0
      %1295 = vmatpush1.bf16.msra.mxu0 0
      %1296 = vmatprep.subr.bf16.mxu0 0
      %1297 = vmatpush1.bf16.msra.mxu0 0
      %1298 = vmatprep.subr.bf16.mxu0 0
      %1299 = vmatpush1.bf16.msra.mxu0 0
      %1300 = vmatprep.subr.bf16.mxu0 0
      %1301 = vmatpush1.bf16.msra.mxu0 0
      %1302 = vmatprep.subr.bf16.mxu0 0
      %1303 = vmatpush1.bf16.msra.mxu0 0
      %1304 = vmatprep.subr.bf16.mxu0 0
      %1305 = vmatpush1.bf16.msra.mxu0 0
      %1306 = vmatprep.mubr.bf16.mxu0 0
      %1307 = vmatmul.mubr.bf16.gmra.mrb[0].mxu0 %v1110
      %v1308 = vpop.f32.mrb[0].mxu0
      %v1309 = vadd.f32 %v1256, %v1308
      %v1310 = vpop.f32.mrb[0].mxu0
      %v1311 = vadd.f32 %v1258, %v1310
      %v1312 = vpop.f32.mrb[0].mxu0
      %v1313 = vadd.f32 %v1260, %v1312
      %v1314 = vpop.f32.mrb[0].mxu0
      %v1315 = vadd.f32 %v1262, %v1314
      %1316 = vmatprep.mubr.bf16.mxu0 0
      %1317 = vmatmul.mubr.bf16.gmra.mrb[0].mxu0 %v1113
      %v1318 = vpop.f32.mrb[0].mxu0
      %v1319 = vadd.f32 %v1266, %v1318
      %v1320 = vpop.f32.mrb[0].mxu0
      %v1321 = vadd.f32 %v1268, %v1320
      %v1322 = vpop.f32.mrb[0].mxu0
      %v1323 = vadd.f32 %v1270, %v1322
      %v1324 = vpop.f32.mrb[0].mxu0
      %v1325 = vadd.f32 %v1272, %v1324
      %1326 = vdwg.mxu0
      %1327 = vmatprep.subr.bf16.mxu0 0
      %1328 = vmatpush1.bf16.msra.mxu0 %v968
      %1329 = vmatprep.subr.bf16.mxu0 0
      %1330 = vmatpush1.bf16.msra.mxu0 %v973
      %1331 = vmatprep.subr.bf16.mxu0 0
      %1332 = vmatpush1.bf16.msra.mxu0 %v978
      %1333 = vmatprep.subr.bf16.mxu0 0
      %1334 = vmatpush1.bf16.msra.mxu0 %v983
      %1335 = vmatprep.subr.bf16.mxu0 0
      %1336 = vmatpush1.bf16.msra.mxu0 %v988
      %1337 = vmatprep.subr.bf16.mxu0 0
      %1338 = vmatpush1.bf16.msra.mxu0 %v993
      %1339 = vmatprep.subr.bf16.mxu0 0
      %1340 = vmatpush1.bf16.msra.mxu0 %v998
      %1341 = vmatprep.subr.bf16.mxu0 0
      %1342 = vmatpush1.bf16.msra.mxu0 %v1003
      %1343 = vmatprep.subr.bf16.mxu0 0
      %1344 = vmatpush1.bf16.msra.mxu0 %v1008
      %1345 = vmatprep.subr.bf16.mxu0 0
      %1346 = vmatpush1.bf16.msra.mxu0 %v1013
      %1347 = vmatprep.subr.bf16.mxu0 0
      %1348 = vmatpush1.bf16.msra.mxu0 %v1018
      %1349 = vmatprep.subr.bf16.mxu0 0
      %1350 = vmatpush1.bf16.msra.mxu0 %v1023
      %1351 = vmatprep.subr.bf16.mxu0 0
      %1352 = vmatpush1.bf16.msra.mxu0 %v1028
      %1353 = vmatprep.subr.bf16.mxu0 0
      %1354 = vmatpush1.bf16.msra.mxu0 %v1033
      %1355 = vmatprep.subr.bf16.mxu0 0
      %1356 = vmatpush1.bf16.msra.mxu0 %v1038
      %1357 = vmatprep.subr.bf16.mxu0 0
      %1358 = vmatpush1.bf16.msra.mxu0 %v1043
      %1359 = vmatprep.mubr.bf16.mxu0 %v1099
      %1360 = vmatmul.mubr.bf16.gmra.mrb[0].mxu0 %v1098
      %v1361 = vpop.f32.mrb[0].mxu0
      %v1362 = vadd.f32 %v1061, %v1361
      %v1363 = vpop.f32.mrb[0].mxu0
      %v1364 = vpop.f32.mrb[0].mxu0
      %v1365 = vadd.f32 %v1066, %v1364
      %v1366 = vpop.f32.mrb[0].mxu0
      %1367 = vmatprep.mubr.bf16.mxu0 %v1102
      %1368 = vmatmul.mubr.bf16.gmra.mrb[0].mxu0 %v1101
      %v1369 = vpop.f32.mrb[0].mxu0
      %v1370 = vadd.f32 %v1071, %v1369
      %v1371 = vpop.f32.mrb[0].mxu0
      %v1372 = vpop.f32.mrb[0].mxu0
      %v1373 = vadd.f32 %v1076, %v1372
      %v1374 = vpop.f32.mrb[0].mxu0
      %1375 = vdwg.mxu0
      %1376 = vmatprep.subr.bf16.mxu0 0
      %1377 = vmatpush1.bf16.msra.mxu0 %v1048
      %1378 = vmatprep.subr.bf16.mxu0 0
      %1379 = vmatpush1.bf16.msra.mxu0 %v1053
      %1380 = vmatprep.subr.bf16.mxu0 0
      %1381 = vmatpush1.bf16.msra.mxu0 0
      %1382 = vmatprep.subr.bf16.mxu0 0
      %1383 = vmatpush1.bf16.msra.mxu0 0
      %1384 = vmatprep.subr.bf16.mxu0 0
      %1385 = vmatpush1.bf16.msra.mxu0 0
      %1386 = vmatprep.subr.bf16.mxu0 0
      %1387 = vmatpush1.bf16.msra.mxu0 0
      %1388 = vmatprep.subr.bf16.mxu0 0
      %1389 = vmatpush1.bf16.msra.mxu0 0
      %1390 = vmatprep.subr.bf16.mxu0 0
      %1391 = vmatpush1.bf16.msra.mxu0 0
      %1392 = vmatprep.subr.bf16.mxu0 0
      %1393 = vmatpush1.bf16.msra.mxu0 0
      %1394 = vmatprep.subr.bf16.mxu0 0
      %1395 = vmatpush1.bf16.msra.mxu0 0
      %1396 = vmatprep.subr.bf16.mxu0 0
      %1397 = vmatpush1.bf16.msra.mxu0 0
      %1398 = vmatprep.subr.bf16.mxu0 0
      %1399 = vmatpush1.bf16.msra.mxu0 0
      %1400 = vmatprep.subr.bf16.mxu0 0
      %1401 = vmatpush1.bf16.msra.mxu0 0
      %1402 = vmatprep.subr.bf16.mxu0 0
      %1403 = vmatpush1.bf16.msra.mxu0 0
      %1404 = vmatprep.subr.bf16.mxu0 0
      %1405 = vmatpush1.bf16.msra.mxu0 0
      %1406 = vmatprep.subr.bf16.mxu0 0
      %1407 = vmatpush1.bf16.msra.mxu0 0
      %1408 = vmatprep.mubr.bf16.mxu0 0
      %1409 = vmatmul.mubr.bf16.gmra.mrb[0].mxu0 %v1110
      %v1410 = vpop.f32.mrb[0].mxu0
      %v1411 = vadd.f32 %v1362, %v1410
      %v1412 = vpop.f32.mrb[0].mxu0
      %v1413 = vpop.f32.mrb[0].mxu0
      %v1414 = vadd.f32 %v1365, %v1413
      %v1415 = vpop.f32.mrb[0].mxu0
      %1416 = vmatprep.mubr.bf16.mxu0 0
      %1417 = vmatmul.mubr.bf16.gmra.mrb[0].mxu0 %v1113
      %v1418 = vpop.f32.mrb[0].mxu0
      %v1419 = vadd.f32 %v1370, %v1418
      %v1420 = vpop.f32.mrb[0].mxu0
      %v1421 = vpop.f32.mrb[0].mxu0
      %v1422 = vadd.f32 %v1373, %v1421
      %v1423 = vpop.f32.mrb[0].mxu0
      %1424 = vdwg.mxu0
      %v1425 = vmax.f32 %v1203, 0.0
      %v1426 = vmax.f32 %v1205, 0.0
      %v1427 = vmax.f32 %v1309, 0.0
      %v1428 = vmax.f32 %v1311, 0.0
      %v1429 = vmax.f32 %v1411, 0.0
      %v1430 = vmax.f32 %v1207, 0.0
      %v1431 = vmax.f32 %v1209, 0.0
      %v1432 = vmax.f32 %v1313, 0.0
      %v1433 = vmax.f32 %v1315, 0.0
      %v1434 = vmax.f32 %v1414, 0.0
      %v1435 = vmax.f32 %v1213, 0.0
      %v1436 = vmax.f32 %v1215, 0.0
      %v1437 = vmax.f32 %v1319, 0.0
      %v1438 = vmax.f32 %v1321, 0.0
      %v1439 = vmax.f32 %v1419, 0.0
      %v1440 = vmax.f32 %v1217, 0.0
      %v1441 = vmax.f32 %v1219, 0.0
      %v1442 = vmax.f32 %v1323, 0.0
      %v1443 = vmax.f32 %v1325, 0.0
      %v1444 = vmax.f32 %v1422, 0.0
      %v1445 = vld [vmem:[%s0] sm:$0x1f]
      %v1447 = vlaneseq
      %v1448 = vshrl.u32 %v1447, 7
      %v1449 = vsub.s32 0, %v1448
      %v1450 = vrot.slane %v1445, %v1449
      %v1451 = vlaneseq
      %v1452 = vshrl.u32 %v1451, 7
      %v1453 = vsub.s32 1, %v1452
      %v1454 = vrot.slane %v1445, %v1453
      %v1455 = vlaneseq
      %v1456 = vshrl.u32 %v1455, 7
      %v1457 = vsub.s32 2, %v1456
      %v1458 = vrot.slane %v1445, %v1457
      %v1459 = vlaneseq
      %v1460 = vshrl.u32 %v1459, 7
      %v1461 = vsub.s32 3, %v1460
      %v1462 = vrot.slane %v1445, %v1461
      %v1463 = vlaneseq
      %v1464 = vshrl.u32 %v1463, 7
      %v1465 = vsub.s32 4, %v1464
      %v1466 = vrot.slane %v1445, %v1465
      %v1472 = vmul.f32 %v1425, %v1450
      %v1473 = vmul.f32 %v1426, %v1454
      %v1474 = vmul.f32 %v1427, %v1458
      %v1475 = vmul.f32 %v1428, %v1462
      %v1476 = vmul.f32 %v1429, %v1466
      %v1477 = vmul.f32 %v1430, %v1450
      %v1478 = vmul.f32 %v1431, %v1454
      %v1479 = vmul.f32 %v1432, %v1458
      %v1480 = vmul.f32 %v1433, %v1462
      %v1481 = vmul.f32 %v1434, %v1466
      %v1482 = vmul.f32 %v1435, %v1450
      %v1483 = vmul.f32 %v1436, %v1454
      %v1484 = vmul.f32 %v1437, %v1458
      %v1485 = vmul.f32 %v1438, %v1462
      %v1486 = vmul.f32 %v1439, %v1466
      %v1487 = vmul.f32 %v1440, %v1450
      %v1488 = vmul.f32 %v1441, %v1454
      %v1489 = vmul.f32 %v1442, %v1458
      %v1490 = vmul.f32 %v1443, %v1462
      %v1491 = vmul.f32 %v1444, %v1466
      %v1492 = vpack.c.bf16 %v1477, %v1472
      %v1493 = vpack.c.bf16 %v1478, %v1473
      %v1494 = vpack.c.bf16 %v1479, %v1474
      %v1495 = vpack.c.bf16 %v1480, %v1475
      %v1496 = vpack.c.bf16 %v1481, %v1476
      %v1497 = vpack.c.bf16 %v1487, %v1482
      %v1498 = vpack.c.bf16 %v1488, %v1483
      %v1499 = vpack.c.bf16 %v1489, %v1484
      %v1500 = vpack.c.bf16 %v1490, %v1485
      %v1501 = vpack.c.bf16 %v1491, %v1486
      %1512 = vrot.lane.b32.xlu0 %v1492, 19
      %v1513 = vpop.permute.xlu0 %1512
      %1514 = vrot.lane.b32.xlu0 %v1493, 19
      %v1515 = vpop.permute.xlu0 %1514
      %1516 = vrot.lane.b32.xlu0 %v1494, 19
      %v1517 = vpop.permute.xlu0 %1516
      %1518 = vrot.lane.b32.xlu0 %v1495, 19
      %v1519 = vpop.permute.xlu0 %1518
      %1520 = vrot.lane.b32.xlu0 %v1496, 19
      %v1521 = vpop.permute.xlu0 %1520
      %1522 = vrot.lane.b32.xlu0 %v1497, 19
      %v1523 = vpop.permute.xlu0 %1522
      %1524 = vrot.lane.b32.xlu0 %v1498, 19
      %v1525 = vpop.permute.xlu0 %1524
      %1526 = vrot.lane.b32.xlu0 %v1499, 19
      %v1527 = vpop.permute.xlu0 %1526
      %1528 = vrot.lane.b32.xlu0 %v1500, 19
      %v1529 = vpop.permute.xlu0 %1528
      %1530 = vrot.lane.b32.xlu0 %v1501, 19
      %v1531 = vpop.permute.xlu0 %1530
      %v1532 = vsel %vm322, %v1513, %v1515
      %v1533 = vsel %vm322, %v1515, %v1517
      %v1534 = vsel %vm322, %v1517, %v1519
      %v1535 = vsel %vm322, %v1519, %v1521
      %v1536 = vsel %vm322, %v1523, %v1525
      %v1537 = vsel %vm322, %v1525, %v1527
      %v1538 = vsel %vm322, %v1527, %v1529
      %v1539 = vsel %vm322, %v1529, %v1531
      %1550 = vst.msk [vmem:[#allocation2] sm:$0xff] %vm341, %v1513
      %1551 = vst [vmem:[#allocation2 + $0x8] sm:$0xff] %v1532
      %1552 = vst [vmem:[#allocation2 + $0x10] sm:$0xff] %v1533
      %1553 = vst [vmem:[#allocation2 + $0x18] sm:$0xff] %v1534
      %1554 = vst.msk [vmem:[#allocation2 + $0x20] sm:$0xff] %vm346, %v1535
      %1555 = vst.msk [vmem:[#allocation2 + $0x30] sm:$0xff] %vm341, %v1523
      %1556 = vst [vmem:[#allocation2 + $0x38] sm:$0xff] %v1536
      %1557 = vst [vmem:[#allocation2 + $0x40] sm:$0xff] %v1537
      %1558 = vst [vmem:[#allocation2 + $0x48] sm:$0xff] %v1538
      %1559 = vst.msk [vmem:[#allocation2 + $0x50] sm:$0xff] %vm346, %v1539
      %v1560 = vld [vmem:[#allocation2] sm:$0xff]
      %v1561 = vld [vmem:[#allocation2 + $0x8] sm:$0xff]
      %v1562 = vld [vmem:[#allocation2 + $0x10] sm:$0xff]
      %v1563 = vld [vmem:[#allocation2 + $0x18] sm:$0xff]
      %v1564 = vld [vmem:[#allocation2 + $0x20] sm:$0xff]
      %v1565 = vld [vmem:[#allocation2 + $0x30] sm:$0xff]
      %v1566 = vld [vmem:[#allocation2 + $0x38] sm:$0xff]
      %v1567 = vld [vmem:[#allocation2 + $0x40] sm:$0xff]
      %v1568 = vld [vmem:[#allocation2 + $0x48] sm:$0xff]
      %v1569 = vld [vmem:[#allocation2 + $0x50] sm:$0xff]
      %1570 = vst [vmem:[#allocation3] sm:$0xff] %v1560
      %1571 = vst [vmem:[#allocation3 + $0x8] sm:$0xff] %v1561
      %1572 = vst [vmem:[#allocation3 + $0x10] sm:$0xff] %v1562
      %1573 = vst [vmem:[#allocation3 + $0x18] sm:$0xff] %v1563
      %1574 = vst.msk [vmem:[#allocation3 + $0x20] sm:$0xff] %vm367, %v1564
      %1575 = vst [vmem:[#allocation3 + $0x28] sm:$0xff] %v1565
      %1576 = vst [vmem:[#allocation3 + $0x30] sm:$0xff] %v1566
      %1577 = vst [vmem:[#allocation3 + $0x38] sm:$0xff] %v1567
      %1578 = vst [vmem:[#allocation3 + $0x40] sm:$0xff] %v1568
      %1579 = vst.msk [vmem:[#allocation3 + $0x48] sm:$0xff] %vm367, %v1569
      %v1580 = vld [vmem:[#allocation2] sm:$0xff]
      %v1581 = vld [vmem:[#allocation2 + $0x8] sm:$0xff]
      %v1582 = vld [vmem:[#allocation2 + $0x10] sm:$0xff]
      %v1583 = vld [vmem:[#allocation2 + $0x18] sm:$0xff]
      %v1584 = vld [vmem:[#allocation2 + $0x20] sm:$0xff]
      %v1585 = vld [vmem:[#allocation2 + $0x30] sm:$0xff]
      %v1586 = vld [vmem:[#allocation2 + $0x38] sm:$0xff]
      %v1587 = vld [vmem:[#allocation2 + $0x40] sm:$0xff]
      %v1588 = vld [vmem:[#allocation2 + $0x48] sm:$0xff]
      %v1589 = vld [vmem:[#allocation2 + $0x50] sm:$0xff]
      %1600 = vrot.lane.b32.xlu0 %v1580, 127
      %v1601 = vpop.permute.xlu0 %1600
      %1602 = vrot.lane.b32.xlu0 %v1581, 127
      %v1603 = vpop.permute.xlu0 %1602
      %1604 = vrot.lane.b32.xlu0 %v1582, 127
      %v1605 = vpop.permute.xlu0 %1604
      %1606 = vrot.lane.b32.xlu0 %v1583, 127
      %v1607 = vpop.permute.xlu0 %1606
      %1608 = vrot.lane.b32.xlu0 %v1584, 127
      %v1609 = vpop.permute.xlu0 %1608
      %1610 = vrot.lane.b32.xlu0 %v1585, 127
      %v1611 = vpop.permute.xlu0 %1610
      %1612 = vrot.lane.b32.xlu0 %v1586, 127
      %v1613 = vpop.permute.xlu0 %1612
      %1614 = vrot.lane.b32.xlu0 %v1587, 127
      %v1615 = vpop.permute.xlu0 %1614
      %1616 = vrot.lane.b32.xlu0 %v1588, 127
      %v1617 = vpop.permute.xlu0 %1616
      %1618 = vrot.lane.b32.xlu0 %v1589, 127
      %v1619 = vpop.permute.xlu0 %1618
      %v1620 = vsel %vm414, %v1601, %v1603
      %v1621 = vsel %vm414, %v1603, %v1605
      %v1622 = vsel %vm414, %v1605, %v1607
      %v1623 = vsel %vm414, %v1607, %v1609
      %v1624 = vsel %vm414, %v1611, %v1613
      %v1625 = vsel %vm414, %v1613, %v1615
      %v1626 = vsel %vm414, %v1615, %v1617
      %v1627 = vsel %vm414, %v1617, %v1619
      %1638 = vst [vmem:[#allocation3 + $0x50] sm:$0xff] %v1620
      %1639 = vst [vmem:[#allocation3 + $0x58] sm:$0xff] %v1621
      %1640 = vst [vmem:[#allocation3 + $0x60] sm:$0xff] %v1622
      %1641 = vst [vmem:[#allocation3 + $0x68] sm:$0xff] %v1623
      %1642 = vst.msk [vmem:[#allocation3 + $0x70] sm:$0xff] %vm367, %v1609
      %1643 = vst [vmem:[#allocation3 + $0x78] sm:$0xff] %v1624
      %1644 = vst [vmem:[#allocation3 + $0x80] sm:$0xff] %v1625
      %1645 = vst [vmem:[#allocation3 + $0x88] sm:$0xff] %v1626
      %1646 = vst [vmem:[#allocation3 + $0x90] sm:$0xff] %v1627
      %1647 = vst.msk [vmem:[#allocation3 + $0x98] sm:$0xff] %vm367, %v1619
      %v1648 = vld [vmem:[#allocation2] sm:$0xff]
      %v1649 = vld [vmem:[#allocation2 + $0x8] sm:$0xff]
      %v1650 = vld [vmem:[#allocation2 + $0x10] sm:$0xff]
      %v1651 = vld [vmem:[#allocation2 + $0x18] sm:$0xff]
      %v1652 = vld [vmem:[#allocation2 + $0x20] sm:$0xff]
      %v1653 = vld [vmem:[#allocation2 + $0x30] sm:$0xff]
      %v1654 = vld [vmem:[#allocation2 + $0x38] sm:$0xff]
      %v1655 = vld [vmem:[#allocation2 + $0x40] sm:$0xff]
      %v1656 = vld [vmem:[#allocation2 + $0x48] sm:$0xff]
      %v1657 = vld [vmem:[#allocation2 + $0x50] sm:$0xff]
      %1668 = vrot.lane.b32.xlu0 %v1648, 126
      %v1669 = vpop.permute.xlu0 %1668
      %1670 = vrot.lane.b32.xlu0 %v1649, 126
      %v1671 = vpop.permute.xlu0 %1670
      %1672 = vrot.lane.b32.xlu0 %v1650, 126
      %v1673 = vpop.permute.xlu0 %1672
      %1674 = vrot.lane.b32.xlu0 %v1651, 126
      %v1675 = vpop.permute.xlu0 %1674
      %1676 = vrot.lane.b32.xlu0 %v1652, 126
      %v1677 = vpop.permute.xlu0 %1676
      %1678 = vrot.lane.b32.xlu0 %v1653, 126
      %v1679 = vpop.permute.xlu0 %1678
      %1680 = vrot.lane.b32.xlu0 %v1654, 126
      %v1681 = vpop.permute.xlu0 %1680
      %1682 = vrot.lane.b32.xlu0 %v1655, 126
      %v1683 = vpop.permute.xlu0 %1682
      %1684 = vrot.lane.b32.xlu0 %v1656, 126
      %v1685 = vpop.permute.xlu0 %1684
      %1686 = vrot.lane.b32.xlu0 %v1657, 126
      %v1687 = vpop.permute.xlu0 %1686
      %v1688 = vsel %vm483, %v1669, %v1671
      %v1689 = vsel %vm483, %v1671, %v1673
      %v1690 = vsel %vm483, %v1673, %v1675
      %v1691 = vsel %vm483, %v1675, %v1677
      %v1692 = vsel %vm483, %v1679, %v1681
      %v1693 = vsel %vm483, %v1681, %v1683
      %v1694 = vsel %vm483, %v1683, %v1685
      %v1695 = vsel %vm483, %v1685, %v1687
      %1706 = vst [vmem:[#allocation3 + $0xa0] sm:$0xff] %v1688
      %1707 = vst [vmem:[#allocation3 + $0xa8] sm:$0xff] %v1689
      %1708 = vst [vmem:[#allocation3 + $0xb0] sm:$0xff] %v1690
      %1709 = vst [vmem:[#allocation3 + $0xb8] sm:$0xff] %v1691
      %1710 = vst.msk [vmem:[#allocation3 + $0xc0] sm:$0xff] %vm367, %v1677
      %1711 = vst [vmem:[#allocation3 + $0xc8] sm:$0xff] %v1692
      %1712 = vst [vmem:[#allocation3 + $0xd0] sm:$0xff] %v1693
      %1713 = vst [vmem:[#allocation3 + $0xd8] sm:$0xff] %v1694
      %1714 = vst [vmem:[#allocation3 + $0xe0] sm:$0xff] %v1695
      %1715 = vst.msk [vmem:[#allocation3 + $0xe8] sm:$0xff] %vm367, %v1687
      %v1716 = vld [vmem:[#allocation2] sm:$0xff]
      %v1717 = vld [vmem:[#allocation2 + $0x8] sm:$0xff]
      %v1718 = vld [vmem:[#allocation2 + $0x10] sm:$0xff]
      %v1719 = vld [vmem:[#allocation2 + $0x18] sm:$0xff]
      %v1720 = vld [vmem:[#allocation2 + $0x20] sm:$0xff]
      %v1721 = vld [vmem:[#allocation2 + $0x30] sm:$0xff]
      %v1722 = vld [vmem:[#allocation2 + $0x38] sm:$0xff]
      %v1723 = vld [vmem:[#allocation2 + $0x40] sm:$0xff]
      %v1724 = vld [vmem:[#allocation2 + $0x48] sm:$0xff]
      %v1725 = vld [vmem:[#allocation2 + $0x50] sm:$0xff]
      %1736 = vrot.lane.b32.xlu0 %v1716, 110
      %v1737 = vpop.permute.xlu0 %1736
      %1738 = vrot.lane.b32.xlu0 %v1717, 110
      %v1739 = vpop.permute.xlu0 %1738
      %1740 = vrot.lane.b32.xlu0 %v1718, 110
      %v1741 = vpop.permute.xlu0 %1740
      %1742 = vrot.lane.b32.xlu0 %v1719, 110
      %v1743 = vpop.permute.xlu0 %1742
      %1744 = vrot.lane.b32.xlu0 %v1720, 110
      %v1745 = vpop.permute.xlu0 %1744
      %1746 = vrot.lane.b32.xlu0 %v1721, 110
      %v1747 = vpop.permute.xlu0 %1746
      %1748 = vrot.lane.b32.xlu0 %v1722, 110
      %v1749 = vpop.permute.xlu0 %1748
      %1750 = vrot.lane.b32.xlu0 %v1723, 110
      %v1751 = vpop.permute.xlu0 %1750
      %1752 = vrot.lane.b32.xlu0 %v1724, 110
      %v1753 = vpop.permute.xlu0 %1752
      %1754 = vrot.lane.b32.xlu0 %v1725, 110
      %v1755 = vpop.permute.xlu0 %1754
      %v1756 = vsel %vm552, %v1737, %v1739
      %v1757 = vsel %vm552, %v1739, %v1741
      %v1758 = vsel %vm552, %v1741, %v1743
      %v1759 = vsel %vm552, %v1743, %v1745
      %v1760 = vsel %vm552, %v1747, %v1749
      %v1761 = vsel %vm552, %v1749, %v1751
      %v1762 = vsel %vm552, %v1751, %v1753
      %v1763 = vsel %vm552, %v1753, %v1755
      %1774 = vst [vmem:[#allocation3 + $0xf0] sm:$0xff] %v1756
      %1775 = vst [vmem:[#allocation3 + $0xf8] sm:$0xff] %v1757
      %1776 = vst [vmem:[#allocation3 + $0x100] sm:$0xff] %v1758
      %1777 = vst [vmem:[#allocation3 + $0x108] sm:$0xff] %v1759
      %1778 = vst.msk [vmem:[#allocation3 + $0x110] sm:$0xff] %vm367, %v1745
      %1779 = vst [vmem:[#allocation3 + $0x118] sm:$0xff] %v1760
      %1780 = vst [vmem:[#allocation3 + $0x120] sm:$0xff] %v1761
      %1781 = vst [vmem:[#allocation3 + $0x128] sm:$0xff] %v1762
      %1782 = vst [vmem:[#allocation3 + $0x130] sm:$0xff] %v1763
      %1783 = vst.msk [vmem:[#allocation3 + $0x138] sm:$0xff] %vm367, %v1755
      %v1784 = vld [vmem:[#allocation2] sm:$0xff]
      %v1785 = vld [vmem:[#allocation2 + $0x8] sm:$0xff]
      %v1786 = vld [vmem:[#allocation2 + $0x10] sm:$0xff]
      %v1787 = vld [vmem:[#allocation2 + $0x18] sm:$0xff]
      %v1788 = vld [vmem:[#allocation2 + $0x20] sm:$0xff]
      %v1789 = vld [vmem:[#allocation2 + $0x30] sm:$0xff]
      %v1790 = vld [vmem:[#allocation2 + $0x38] sm:$0xff]
      %v1791 = vld [vmem:[#allocation2 + $0x40] sm:$0xff]
      %v1792 = vld [vmem:[#allocation2 + $0x48] sm:$0xff]
      %v1793 = vld [vmem:[#allocation2 + $0x50] sm:$0xff]
      %1804 = vrot.lane.b32.xlu0 %v1784, 109
      %v1805 = vpop.permute.xlu0 %1804
      %1806 = vrot.lane.b32.xlu0 %v1785, 109
      %v1807 = vpop.permute.xlu0 %1806
      %1808 = vrot.lane.b32.xlu0 %v1786, 109
      %v1809 = vpop.permute.xlu0 %1808
      %1810 = vrot.lane.b32.xlu0 %v1787, 109
      %v1811 = vpop.permute.xlu0 %1810
      %1812 = vrot.lane.b32.xlu0 %v1788, 109
      %v1813 = vpop.permute.xlu0 %1812
      %1814 = vrot.lane.b32.xlu0 %v1789, 109
      %v1815 = vpop.permute.xlu0 %1814
      %1816 = vrot.lane.b32.xlu0 %v1790, 109
      %v1817 = vpop.permute.xlu0 %1816
      %1818 = vrot.lane.b32.xlu0 %v1791, 109
      %v1819 = vpop.permute.xlu0 %1818
      %1820 = vrot.lane.b32.xlu0 %v1792, 109
      %v1821 = vpop.permute.xlu0 %1820
      %1822 = vrot.lane.b32.xlu0 %v1793, 109
      %v1823 = vpop.permute.xlu0 %1822
      %v1824 = vsel %vm621, %v1805, %v1807
      %v1825 = vsel %vm621, %v1807, %v1809
      %v1826 = vsel %vm621, %v1809, %v1811
      %v1827 = vsel %vm621, %v1811, %v1813
      %v1828 = vsel %vm621, %v1815, %v1817
      %v1829 = vsel %vm621, %v1817, %v1819
      %v1830 = vsel %vm621, %v1819, %v1821
      %v1831 = vsel %vm621, %v1821, %v1823
      %1842 = vst [vmem:[#allocation3 + $0x140] sm:$0xff] %v1824
      %1843 = vst [vmem:[#allocation3 + $0x148] sm:$0xff] %v1825
      %1844 = vst [vmem:[#allocation3 + $0x150] sm:$0xff] %v1826
      %1845 = vst [vmem:[#allocation3 + $0x158] sm:$0xff] %v1827
      %1846 = vst.msk [vmem:[#allocation3 + $0x160] sm:$0xff] %vm367, %v1813
      %1847 = vst [vmem:[#allocation3 + $0x168] sm:$0xff] %v1828
      %1848 = vst [vmem:[#allocation3 + $0x170] sm:$0xff] %v1829
      %1849 = vst [vmem:[#allocation3 + $0x178] sm:$0xff] %v1830
      %1850 = vst [vmem:[#allocation3 + $0x180] sm:$0xff] %v1831
      %1851 = vst.msk [vmem:[#allocation3 + $0x188] sm:$0xff] %vm367, %v1823
      %v1852 = vld [vmem:[#allocation2] sm:$0xff]
      %v1853 = vld [vmem:[#allocation2 + $0x8] sm:$0xff]
      %v1854 = vld [vmem:[#allocation2 + $0x10] sm:$0xff]
      %v1855 = vld [vmem:[#allocation2 + $0x18] sm:$0xff]
      %v1856 = vld [vmem:[#allocation2 + $0x20] sm:$0xff]
      %v1857 = vld [vmem:[#allocation2 + $0x30] sm:$0xff]
      %v1858 = vld [vmem:[#allocation2 + $0x38] sm:$0xff]
      %v1859 = vld [vmem:[#allocation2 + $0x40] sm:$0xff]
      %v1860 = vld [vmem:[#allocation2 + $0x48] sm:$0xff]
      %v1861 = vld [vmem:[#allocation2 + $0x50] sm:$0xff]
      %1872 = vrot.lane.b32.xlu0 %v1852, 108
      %v1873 = vpop.permute.xlu0 %1872
      %1874 = vrot.lane.b32.xlu0 %v1853, 108
      %v1875 = vpop.permute.xlu0 %1874
      %1876 = vrot.lane.b32.xlu0 %v1854, 108
      %v1877 = vpop.permute.xlu0 %1876
      %1878 = vrot.lane.b32.xlu0 %v1855, 108
      %v1879 = vpop.permute.xlu0 %1878
      %1880 = vrot.lane.b32.xlu0 %v1856, 108
      %v1881 = vpop.permute.xlu0 %1880
      %1882 = vrot.lane.b32.xlu0 %v1857, 108
      %v1883 = vpop.permute.xlu0 %1882
      %1884 = vrot.lane.b32.xlu0 %v1858, 108
      %v1885 = vpop.permute.xlu0 %1884
      %1886 = vrot.lane.b32.xlu0 %v1859, 108
      %v1887 = vpop.permute.xlu0 %1886
      %1888 = vrot.lane.b32.xlu0 %v1860, 108
      %v1889 = vpop.permute.xlu0 %1888
      %1890 = vrot.lane.b32.xlu0 %v1861, 108
      %v1891 = vpop.permute.xlu0 %1890
      %v1892 = vsel %vm690, %v1873, %v1875
      %v1893 = vsel %vm690, %v1875, %v1877
      %v1894 = vsel %vm690, %v1877, %v1879
      %v1895 = vsel %vm690, %v1879, %v1881
      %v1896 = vsel %vm690, %v1883, %v1885
      %v1897 = vsel %vm690, %v1885, %v1887
      %v1898 = vsel %vm690, %v1887, %v1889
      %v1899 = vsel %vm690, %v1889, %v1891
      %1910 = vst [vmem:[#allocation3 + $0x190] sm:$0xff] %v1892
      %1911 = vst [vmem:[#allocation3 + $0x198] sm:$0xff] %v1893
      %1912 = vst [vmem:[#allocation3 + $0x1a0] sm:$0xff] %v1894
      %1913 = vst [vmem:[#allocation3 + $0x1a8] sm:$0xff] %v1895
      %1914 = vst.msk [vmem:[#allocation3 + $0x1b0] sm:$0xff] %vm367, %v1881
      %1915 = vst [vmem:[#allocation3 + $0x1b8] sm:$0xff] %v1896
      %1916 = vst [vmem:[#allocation3 + $0x1c0] sm:$0xff] %v1897
      %1917 = vst [vmem:[#allocation3 + $0x1c8] sm:$0xff] %v1898
      %1918 = vst [vmem:[#allocation3 + $0x1d0] sm:$0xff] %v1899
      %1919 = vst.msk [vmem:[#allocation3 + $0x1d8] sm:$0xff] %vm367, %v1891
      %v1920 = vld [vmem:[#allocation2] sm:$0xff]
      %v1921 = vld [vmem:[#allocation2 + $0x8] sm:$0xff]
      %v1922 = vld [vmem:[#allocation2 + $0x10] sm:$0xff]
      %v1923 = vld [vmem:[#allocation2 + $0x18] sm:$0xff]
      %v1924 = vld [vmem:[#allocation2 + $0x20] sm:$0xff]
      %v1925 = vld [vmem:[#allocation2 + $0x28] sm:$0xff]
      %v1926 = vld [vmem:[#allocation2 + $0x30] sm:$0xff]
      %v1927 = vld [vmem:[#allocation2 + $0x38] sm:$0xff]
      %v1928 = vld [vmem:[#allocation2 + $0x40] sm:$0xff]
      %v1929 = vld [vmem:[#allocation2 + $0x48] sm:$0xff]
      %v1930 = vld [vmem:[#allocation2 + $0x50] sm:$0xff]
      %v1931 = vld [vmem:[#allocation2 + $0x58] sm:$0xff]
      %1944 = vrot.lane.b32.xlu0 %v1920, 92
      %v1945 = vpop.permute.xlu0 %1944
      %1946 = vrot.lane.b32.xlu0 %v1921, 92
      %v1947 = vpop.permute.xlu0 %1946
      %1948 = vrot.lane.b32.xlu0 %v1922, 92
      %v1949 = vpop.permute.xlu0 %1948
      %1950 = vrot.lane.b32.xlu0 %v1923, 92
      %v1951 = vpop.permute.xlu0 %1950
      %1952 = vrot.lane.b32.xlu0 %v1924, 92
      %v1953 = vpop.permute.xlu0 %1952
      %1954 = vrot.lane.b32.xlu0 %v1925, 92
      %v1955 = vpop.permute.xlu0 %1954
      %1956 = vrot.lane.b32.xlu0 %v1926, 92
      %v1957 = vpop.permute.xlu0 %1956
      %1958 = vrot.lane.b32.xlu0 %v1927, 92
      %v1959 = vpop.permute.xlu0 %1958
      %1960 = vrot.lane.b32.xlu0 %v1928, 92
      %v1961 = vpop.permute.xlu0 %1960
      %1962 = vrot.lane.b32.xlu0 %v1929, 92
      %v1963 = vpop.permute.xlu0 %1962
      %1964 = vrot.lane.b32.xlu0 %v1930, 92
      %v1965 = vpop.permute.xlu0 %1964
      %1966 = vrot.lane.b32.xlu0 %v1931, 92
      %v1967 = vpop.permute.xlu0 %1966
      %v1968 = vsel %vm767, %v1945, %v1947
      %v1969 = vsel %vm767, %v1947, %v1949
      %v1970 = vsel %vm767, %v1949, %v1951
      %v1971 = vsel %vm767, %v1951, %v1953
      %v1972 = vsel %vm767, %v1953, %v1955
      %v1973 = vsel %vm767, %v1957, %v1959
      %v1974 = vsel %vm767, %v1959, %v1961
      %v1975 = vsel %vm767, %v1961, %v1963
      %v1976 = vsel %vm767, %v1963, %v1965
      %v1977 = vsel %vm767, %v1965, %v1967
      %1988 = vst [vmem:[#allocation3 + $0x1e0] sm:$0xff] %v1968
      %1989 = vst [vmem:[#allocation3 + $0x1e8] sm:$0xff] %v1969
      %1990 = vst [vmem:[#allocation3 + $0x1f0] sm:$0xff] %v1970
      %1991 = vst [vmem:[#allocation3 + $0x1f8] sm:$0xff] %v1971
      %1992 = vst.msk [vmem:[#allocation3 + $0x200] sm:$0xff] %vm367, %v1972
      %1993 = vst [vmem:[#allocation3 + $0x208] sm:$0xff] %v1973
      %1994 = vst [vmem:[#allocation3 + $0x210] sm:$0xff] %v1974
      %1995 = vst [vmem:[#allocation3 + $0x218] sm:$0xff] %v1975
      %1996 = vst [vmem:[#allocation3 + $0x220] sm:$0xff] %v1976
      %1997 = vst.msk [vmem:[#allocation3 + $0x228] sm:$0xff] %vm367, %v1977
      %v1998 = vld [vmem:[#allocation2] sm:$0xff]
      %v1999 = vld [vmem:[#allocation2 + $0x8] sm:$0xff]
      %v2000 = vld [vmem:[#allocation2 + $0x10] sm:$0xff]
      %v2001 = vld [vmem:[#allocation2 + $0x18] sm:$0xff]
      %v2002 = vld [vmem:[#allocation2 + $0x20] sm:$0xff]
      %v2003 = vld [vmem:[#allocation2 + $0x28] sm:$0xff]
      %v2004 = vld [vmem:[#allocation2 + $0x30] sm:$0xff]
      %v2005 = vld [vmem:[#allocation2 + $0x38] sm:$0xff]
      %v2006 = vld [vmem:[#allocation2 + $0x40] sm:$0xff]
      %v2007 = vld [vmem:[#allocation2 + $0x48] sm:$0xff]
      %v2008 = vld [vmem:[#allocation2 + $0x50] sm:$0xff]
      %v2009 = vld [vmem:[#allocation2 + $0x58] sm:$0xff]
      %2022 = vrot.lane.b32.xlu0 %v1998, 91
      %v2023 = vpop.permute.xlu0 %2022
      %2024 = vrot.lane.b32.xlu0 %v1999, 91
      %v2025 = vpop.permute.xlu0 %2024
      %2026 = vrot.lane.b32.xlu0 %v2000, 91
      %v2027 = vpop.permute.xlu0 %2026
      %2028 = vrot.lane.b32.xlu0 %v2001, 91
      %v2029 = vpop.permute.xlu0 %2028
      %2030 = vrot.lane.b32.xlu0 %v2002, 91
      %v2031 = vpop.permute.xlu0 %2030
      %2032 = vrot.lane.b32.xlu0 %v2003, 91
      %v2033 = vpop.permute.xlu0 %2032
      %2034 = vrot.lane.b32.xlu0 %v2004, 91
      %v2035 = vpop.permute.xlu0 %2034
      %2036 = vrot.lane.b32.xlu0 %v2005, 91
      %v2037 = vpop.permute.xlu0 %2036
      %2038 = vrot.lane.b32.xlu0 %v2006, 91
      %v2039 = vpop.permute.xlu0 %2038
      %2040 = vrot.lane.b32.xlu0 %v2007, 91
      %v2041 = vpop.permute.xlu0 %2040
      %2042 = vrot.lane.b32.xlu0 %v2008, 91
      %v2043 = vpop.permute.xlu0 %2042
      %2044 = vrot.lane.b32.xlu0 %v2009, 91
      %v2045 = vpop.permute.xlu0 %2044
      %v2046 = vsel %vm846, %v2023, %v2025
      %v2047 = vsel %vm846, %v2025, %v2027
      %v2048 = vsel %vm846, %v2027, %v2029
      %v2049 = vsel %vm846, %v2029, %v2031
      %v2050 = vsel %vm846, %v2031, %v2033
      %v2051 = vsel %vm846, %v2035, %v2037
      %v2052 = vsel %vm846, %v2037, %v2039
      %v2053 = vsel %vm846, %v2039, %v2041
      %v2054 = vsel %vm846, %v2041, %v2043
      %v2055 = vsel %vm846, %v2043, %v2045
      %2066 = vst [vmem:[#allocation3 + $0x230] sm:$0xff] %v2046
      %2067 = vst [vmem:[#allocation3 + $0x238] sm:$0xff] %v2047
      %2068 = vst [vmem:[#allocation3 + $0x240] sm:$0xff] %v2048
      %2069 = vst [vmem:[#allocation3 + $0x248] sm:$0xff] %v2049
      %2070 = vst.msk [vmem:[#allocation3 + $0x250] sm:$0xff] %vm367, %v2050
      %2071 = vst [vmem:[#allocation3 + $0x258] sm:$0xff] %v2051
      %2072 = vst [vmem:[#allocation3 + $0x260] sm:$0xff] %v2052
      %2073 = vst [vmem:[#allocation3 + $0x268] sm:$0xff] %v2053
      %2074 = vst [vmem:[#allocation3 + $0x270] sm:$0xff] %v2054
      %2075 = vst.msk [vmem:[#allocation3 + $0x278] sm:$0xff] %vm367, %v2055
      %v2076 = vld [vmem:[#allocation2] sm:$0xff]
      %v2077 = vld [vmem:[#allocation2 + $0x8] sm:$0xff]
      %v2078 = vld [vmem:[#allocation2 + $0x10] sm:$0xff]
      %v2079 = vld [vmem:[#allocation2 + $0x18] sm:$0xff]
      %v2080 = vld [vmem:[#allocation2 + $0x20] sm:$0xff]
      %v2081 = vld [vmem:[#allocation2 + $0x28] sm:$0xff]
      %v2082 = vld [vmem:[#allocation2 + $0x30] sm:$0xff]
      %v2083 = vld [vmem:[#allocation2 + $0x38] sm:$0xff]
      %v2084 = vld [vmem:[#allocation2 + $0x40] sm:$0xff]
      %v2085 = vld [vmem:[#allocation2 + $0x48] sm:$0xff]
      %v2086 = vld [vmem:[#allocation2 + $0x50] sm:$0xff]
      %v2087 = vld [vmem:[#allocation2 + $0x58] sm:$0xff]
      %2100 = vrot.lane.b32.xlu0 %v2076, 90
      %v2101 = vpop.permute.xlu0 %2100
      %2102 = vrot.lane.b32.xlu0 %v2077, 90
      %v2103 = vpop.permute.xlu0 %2102
      %2104 = vrot.lane.b32.xlu0 %v2078, 90
      %v2105 = vpop.permute.xlu0 %2104
      %2106 = vrot.lane.b32.xlu0 %v2079, 90
      %v2107 = vpop.permute.xlu0 %2106
      %2108 = vrot.lane.b32.xlu0 %v2080, 90
      %v2109 = vpop.permute.xlu0 %2108
      %2110 = vrot.lane.b32.xlu0 %v2081, 90
      %v2111 = vpop.permute.xlu0 %2110
      %2112 = vrot.lane.b32.xlu0 %v2082, 90
      %v2113 = vpop.permute.xlu0 %2112
      %2114 = vrot.lane.b32.xlu0 %v2083, 90
      %v2115 = vpop.permute.xlu0 %2114
      %2116 = vrot.lane.b32.xlu0 %v2084, 90
      %v2117 = vpop.permute.xlu0 %2116
      %2118 = vrot.lane.b32.xlu0 %v2085, 90
      %v2119 = vpop.permute.xlu0 %2118
      %2120 = vrot.lane.b32.xlu0 %v2086, 90
      %v2121 = vpop.permute.xlu0 %2120
      %2122 = vrot.lane.b32.xlu0 %v2087, 90
      %v2123 = vpop.permute.xlu0 %2122
      %v2124 = vsel %vm925, %v2101, %v2103
      %v2125 = vsel %vm925, %v2103, %v2105
      %v2126 = vsel %vm925, %v2105, %v2107
      %v2127 = vsel %vm925, %v2107, %v2109
      %v2128 = vsel %vm925, %v2109, %v2111
      %v2129 = vsel %vm925, %v2113, %v2115
      %v2130 = vsel %vm925, %v2115, %v2117
      %v2131 = vsel %vm925, %v2117, %v2119
      %v2132 = vsel %vm925, %v2119, %v2121
      %v2133 = vsel %vm925, %v2121, %v2123
      %2144 = vst [vmem:[#allocation3 + $0x280] sm:$0xff] %v2124
      %2145 = vst [vmem:[#allocation3 + $0x288] sm:$0xff] %v2125
      %2146 = vst [vmem:[#allocation3 + $0x290] sm:$0xff] %v2126
      %2147 = vst [vmem:[#allocation3 + $0x298] sm:$0xff] %v2127
      %2148 = vst.msk [vmem:[#allocation3 + $0x2a0] sm:$0xff] %vm367, %v2128
      %2149 = vst [vmem:[#allocation3 + $0x2a8] sm:$0xff] %v2129
      %2150 = vst [vmem:[#allocation3 + $0x2b0] sm:$0xff] %v2130
      %2151 = vst [vmem:[#allocation3 + $0x2b8] sm:$0xff] %v2131
      %2152 = vst [vmem:[#allocation3 + $0x2c0] sm:$0xff] %v2132
      %2153 = vst.msk [vmem:[#allocation3 + $0x2c8] sm:$0xff] %vm367, %v2133
      %v2154 = vld [vmem:[%s4] sm:$0xff]
      %v2155 = vld [vmem:[%s4 + $0x8] sm:$0xf]
      %v2156 = vld [vmem:[%s4 + $0xc] sm:$0xff]
      %v2157 = vld [vmem:[%s4 + $0x14] sm:$0xf]
      %v2158 = vld [vmem:[%s4 + $0x18] sm:$0xff]
      %v2159 = vld [vmem:[%s4 + $0x20] sm:$0xf]
      %v2160 = vld [vmem:[%s4 + $0x24] sm:$0xff]
      %v2161 = vld [vmem:[%s4 + $0x2c] sm:$0xf]
      %v2162 = vld [vmem:[#allocation3] sm:$0xff]
      %v2163 = vld [vmem:[#allocation3 + $0x8] sm:$0xff]
      %v2164 = vld [vmem:[#allocation3 + $0x10] sm:$0xff]
      %v2165 = vld [vmem:[#allocation3 + $0x18] sm:$0xff]
      %v2166 = vld [vmem:[#allocation3 + $0x20] sm:$0xff]
      %v2167 = vld [vmem:[#allocation3 + $0x28] sm:$0xff]
      %v2168 = vld [vmem:[#allocation3 + $0x30] sm:$0xff]
      %v2169 = vld [vmem:[#allocation3 + $0x38] sm:$0xff]
      %v2170 = vld [vmem:[#allocation3 + $0x40] sm:$0xff]
      %v2171 = vld [vmem:[#allocation3 + $0x48] sm:$0xff]
      %v2172 = vld [vmem:[#allocation3 + $0x50] sm:$0xff]
      %v2173 = vld [vmem:[#allocation3 + $0x58] sm:$0xff]
      %v2174 = vld [vmem:[#allocation3 + $0x60] sm:$0xff]
      %v2175 = vld [vmem:[#allocation3 + $0x68] sm:$0xff]
      %v2176 = vld [vmem:[#allocation3 + $0x70] sm:$0xff]
      %v2177 = vld [vmem:[#allocation3 + $0x78] sm:$0xff]
      %v2178 = vld [vmem:[#allocation3 + $0x80] sm:$0xff]
      %v2179 = vld [vmem:[#allocation3 + $0x88] sm:$0xff]
      %v2180 = vld [vmem:[#allocation3 + $0x90] sm:$0xff]
      %v2181 = vld [vmem:[#allocation3 + $0x98] sm:$0xff]
      %v2182 = vld [vmem:[#allocation3 + $0xa0] sm:$0xff]
      %v2183 = vld [vmem:[#allocation3 + $0xa8] sm:$0xff]
      %v2184 = vld [vmem:[#allocation3 + $0xb0] sm:$0xff]
      %v2185 = vld [vmem:[#allocation3 + $0xb8] sm:$0xff]
      %v2186 = vld [vmem:[#allocation3 + $0xc0] sm:$0xff]
      %v2187 = vld [vmem:[#allocation3 + $0xc8] sm:$0xff]
      %v2188 = vld [vmem:[#allocation3 + $0xd0] sm:$0xff]
      %v2189 = vld [vmem:[#allocation3 + $0xd8] sm:$0xff]
      %v2190 = vld [vmem:[#allocation3 + $0xe0] sm:$0xff]
      %v2191 = vld [vmem:[#allocation3 + $0xe8] sm:$0xff]
      %v2192 = vld [vmem:[#allocation3 + $0xf0] sm:$0xff]
      %v2193 = vld [vmem:[#allocation3 + $0xf8] sm:$0xff]
      %v2194 = vld [vmem:[#allocation3 + $0x100] sm:$0xff]
      %v2195 = vld [vmem:[#allocation3 + $0x108] sm:$0xff]
      %v2196 = vld [vmem:[#allocation3 + $0x110] sm:$0xff]
      %v2197 = vld [vmem:[#allocation3 + $0x118] sm:$0xff]
      %v2198 = vld [vmem:[#allocation3 + $0x120] sm:$0xff]
      %v2199 = vld [vmem:[#allocation3 + $0x128] sm:$0xff]
      %v2200 = vld [vmem:[#allocation3 + $0x130] sm:$0xff]
      %v2201 = vld [vmem:[#allocation3 + $0x138] sm:$0xff]
      %v2202 = vld [vmem:[#allocation3 + $0x140] sm:$0xff]
      %v2203 = vld [vmem:[#allocation3 + $0x148] sm:$0xff]
      %v2204 = vld [vmem:[#allocation3 + $0x150] sm:$0xff]
      %v2205 = vld [vmem:[#allocation3 + $0x158] sm:$0xff]
      %v2206 = vld [vmem:[#allocation3 + $0x160] sm:$0xff]
      %v2207 = vld [vmem:[#allocation3 + $0x168] sm:$0xff]
      %v2208 = vld [vmem:[#allocation3 + $0x170] sm:$0xff]
      %v2209 = vld [vmem:[#allocation3 + $0x178] sm:$0xff]
      %v2210 = vld [vmem:[#allocation3 + $0x180] sm:$0xff]
      %v2211 = vld [vmem:[#allocation3 + $0x188] sm:$0xff]
      %v2212 = vld [vmem:[#allocation3 + $0x190] sm:$0xff]
      %v2213 = vld [vmem:[#allocation3 + $0x198] sm:$0xff]
      %v2214 = vld [vmem:[#allocation3 + $0x1a0] sm:$0xff]
      %v2215 = vld [vmem:[#allocation3 + $0x1a8] sm:$0xff]
      %v2216 = vld [vmem:[#allocation3 + $0x1b0] sm:$0xff]
      %v2217 = vld [vmem:[#allocation3 + $0x1b8] sm:$0xff]
      %v2218 = vld [vmem:[#allocation3 + $0x1c0] sm:$0xff]
      %v2219 = vld [vmem:[#allocation3 + $0x1c8] sm:$0xff]
      %v2220 = vld [vmem:[#allocation3 + $0x1d0] sm:$0xff]
      %v2221 = vld [vmem:[#allocation3 + $0x1d8] sm:$0xff]
      %v2222 = vld [vmem:[#allocation3 + $0x1e0] sm:$0xff]
      %v2223 = vld [vmem:[#allocation3 + $0x1e8] sm:$0xff]
      %v2224 = vld [vmem:[#allocation3 + $0x1f0] sm:$0xff]
      %v2225 = vld [vmem:[#allocation3 + $0x1f8] sm:$0xff]
      %v2226 = vld [vmem:[#allocation3 + $0x200] sm:$0xff]
      %v2227 = vld [vmem:[#allocation3 + $0x208] sm:$0xff]
      %v2228 = vld [vmem:[#allocation3 + $0x210] sm:$0xff]
      %v2229 = vld [vmem:[#allocation3 + $0x218] sm:$0xff]
      %v2230 = vld [vmem:[#allocation3 + $0x220] sm:$0xff]
      %v2231 = vld [vmem:[#allocation3 + $0x228] sm:$0xff]
      %v2232 = vld [vmem:[#allocation3 + $0x230] sm:$0xff]
      %v2233 = vld [vmem:[#allocation3 + $0x238] sm:$0xff]
      %v2234 = vld [vmem:[#allocation3 + $0x240] sm:$0xff]
      %v2235 = vld [vmem:[#allocation3 + $0x248] sm:$0xff]
      %v2236 = vld [vmem:[#allocation3 + $0x250] sm:$0xff]
      %v2237 = vld [vmem:[#allocation3 + $0x258] sm:$0xff]
      %v2238 = vld [vmem:[#allocation3 + $0x260] sm:$0xff]
      %v2239 = vld [vmem:[#allocation3 + $0x268] sm:$0xff]
      %v2240 = vld [vmem:[#allocation3 + $0x270] sm:$0xff]
      %v2241 = vld [vmem:[#allocation3 + $0x278] sm:$0xff]
      %v2242 = vld [vmem:[#allocation3 + $0x280] sm:$0xff]
      %v2243 = vld [vmem:[#allocation3 + $0x288] sm:$0xff]
      %v2244 = vld [vmem:[#allocation3 + $0x290] sm:$0xff]
      %v2245 = vld [vmem:[#allocation3 + $0x298] sm:$0xff]
      %v2246 = vld [vmem:[#allocation3 + $0x2a0] sm:$0xff]
      %v2247 = vld [vmem:[#allocation3 + $0x2a8] sm:$0xff]
      %v2248 = vld [vmem:[#allocation3 + $0x2b0] sm:$0xff]
      %v2249 = vld [vmem:[#allocation3 + $0x2b8] sm:$0xff]
      %v2250 = vld [vmem:[#allocation3 + $0x2c0] sm:$0xff]
      %v2251 = vld [vmem:[#allocation3 + $0x2c8] sm:$0xff]
      %v2252 = vld [vmem:[%s5] sm:$0xff]
      %v2253 = vld [vmem:[%s5 + $0x8] sm:$0xff]
      %v2254 = vld [vmem:[%s5 + $0x10] sm:$0xff]
      %v2255 = vld [vmem:[%s5 + $0x18] sm:$0xff]
      %2257 = vset.pattern.permute.xlu0 0
      %2258 = vperm.xlu0 %2257, %v2252
      %v2259 = vpop.permute.xlu0 %2258
      %2262 = vset.pattern.permute.xlu0 0
      %2263 = vperm.xlu0 %2262, %v2253
      %v2264 = vpop.permute.xlu0 %2263
      %2267 = vset.pattern.permute.xlu0 0
      %2268 = vperm.xlu0 %2267, %v2254
      %v2269 = vpop.permute.xlu0 %2268
      %2272 = vset.pattern.permute.xlu0 0
      %2273 = vperm.xlu0 %2272, %v2255
      %v2274 = vpop.permute.xlu0 %2273
      %v2284 = vunpack.c.l.b16 %v2154
      %v2285 = vunpack.c.h.b16 %v2154
      %v2286 = vunpack.c.l.b16 %v2155
      %v2287 = vunpack.c.l.b16 %v2156
      %v2288 = vunpack.c.h.b16 %v2156
      %v2289 = vunpack.c.l.b16 %v2157
      %v2290 = vunpack.c.l.b16 %v2158
      %v2291 = vunpack.c.h.b16 %v2158
      %v2292 = vunpack.c.l.b16 %v2159
      %v2293 = vunpack.c.l.b16 %v2160
      %v2294 = vunpack.c.h.b16 %v2160
      %v2295 = vunpack.c.l.b16 %v2161
      %v2296 = vpack.c.b16 %v2287, %v2284
      %v2297 = vpack.c.b16 %v2288, %v2285
      %v2298 = vpack.c.b16 %v2289, %v2286
      %v2299 = vpack.c.b16 %v2293, %v2290
      %v2300 = vpack.c.b16 %v2294, %v2291
      %v2301 = vpack.c.b16 %v2295, %v2292
      %v2307 = vsel %vm1108, %v2298, 0
      %v2310 = vsel %vm1108, %v2301, 0
      %2312 = vmatprep.subr.bf16.mxu0 %v2163
      %2313 = vmatpush1.bf16.msra.mxu0 %v2162
      %2314 = vmatprep.subr.bf16.mxu0 %v2168
      %2315 = vmatpush1.bf16.msra.mxu0 %v2167
      %2316 = vmatprep.subr.bf16.mxu0 %v2173
      %2317 = vmatpush1.bf16.msra.mxu0 %v2172
      %2318 = vmatprep.subr.bf16.mxu0 %v2178
      %2319 = vmatpush1.bf16.msra.mxu0 %v2177
      %2320 = vmatprep.subr.bf16.mxu0 %v2183
      %2321 = vmatpush1.bf16.msra.mxu0 %v2182
      %2322 = vmatprep.subr.bf16.mxu0 %v2188
      %2323 = vmatpush1.bf16.msra.mxu0 %v2187
      %2324 = vmatprep.subr.bf16.mxu0 %v2193
      %2325 = vmatpush1.bf16.msra.mxu0 %v2192
      %2326 = vmatprep.subr.bf16.mxu0 %v2198
      %2327 = vmatpush1.bf16.msra.mxu0 %v2197
      %2328 = vmatprep.subr.bf16.mxu0 %v2203
      %2329 = vmatpush1.bf16.msra.mxu0 %v2202
      %2330 = vmatprep.subr.bf16.mxu0 %v2208
      %2331 = vmatpush1.bf16.msra.mxu0 %v2207
      %2332 = vmatprep.subr.bf16.mxu0 %v2213
      %2333 = vmatpush1.bf16.msra.mxu0 %v2212
      %2334 = vmatprep.subr.bf16.mxu0 %v2218
      %2335 = vmatpush1.bf16.msra.mxu0 %v2217
      %2336 = vmatprep.subr.bf16.mxu0 %v2223
      %2337 = vmatpush1.bf16.msra.mxu0 %v2222
      %2338 = vmatprep.subr.bf16.mxu0 %v2228
      %2339 = vmatpush1.bf16.msra.mxu0 %v2227
      %2340 = vmatprep.subr.bf16.mxu0 %v2233
      %2341 = vmatpush1.bf16.msra.mxu0 %v2232
      %2342 = vmatprep.subr.bf16.mxu0 %v2238
      %2343 = vmatpush1.bf16.msra.mxu0 %v2237
      %2344 = vmatprep.mubr.bf16.mxu0 %v2297
      %2345 = vmatmul.mubr.bf16.gmra.mrb[0].mxu0 %v2296
      %v2346 = vpop.f32.mrb[0].mxu0
      %v2347 = vadd.f32 %v2259, %v2346
      %v2348 = vpop.f32.mrb[0].mxu0
      %v2349 = vadd.f32 %v2259, %v2348
      %v2350 = vpop.f32.mrb[0].mxu0
      %v2351 = vadd.f32 %v2264, %v2350
      %v2352 = vpop.f32.mrb[0].mxu0
      %v2353 = vadd.f32 %v2264, %v2352
      %2354 = vmatprep.mubr.bf16.mxu0 %v2300
      %2355 = vmatmul.mubr.bf16.gmra.mrb[0].mxu0 %v2299
      %v2356 = vpop.f32.mrb[0].mxu0
      %v2357 = vadd.f32 %v2269, %v2356
      %v2358 = vpop.f32.mrb[0].mxu0
      %v2359 = vadd.f32 %v2269, %v2358
      %v2360 = vpop.f32.mrb[0].mxu0
      %v2361 = vadd.f32 %v2274, %v2360
      %v2362 = vpop.f32.mrb[0].mxu0
      %v2363 = vadd.f32 %v2274, %v2362
      %2364 = vdwg.mxu0
      %2365 = vmatprep.subr.bf16.mxu0 %v2243
      %2366 = vmatpush1.bf16.msra.mxu0 %v2242
      %2367 = vmatprep.subr.bf16.mxu0 %v2248
      %2368 = vmatpush1.bf16.msra.mxu0 %v2247
      %2369 = vmatprep.subr.bf16.mxu0 0
      %2370 = vmatpush1.bf16.msra.mxu0 0
      %2371 = vmatprep.subr.bf16.mxu0 0
      %2372 = vmatpush1.bf16.msra.mxu0 0
      %2373 = vmatprep.subr.bf16.mxu0 0
      %2374 = vmatpush1.bf16.msra.mxu0 0
      %2375 = vmatprep.subr.bf16.mxu0 0
      %2376 = vmatpush1.bf16.msra.mxu0 0
      %2377 = vmatprep.subr.bf16.mxu0 0
      %2378 = vmatpush1.bf16.msra.mxu0 0
      %2379 = vmatprep.subr.bf16.mxu0 0
      %2380 = vmatpush1.bf16.msra.mxu0 0
      %2381 = vmatprep.subr.bf16.mxu0 0
      %2382 = vmatpush1.bf16.msra.mxu0 0
      %2383 = vmatprep.subr.bf16.mxu0 0
      %2384 = vmatpush1.bf16.msra.mxu0 0
      %2385 = vmatprep.subr.bf16.mxu0 0
      %2386 = vmatpush1.bf16.msra.mxu0 0
      %2387 = vmatprep.subr.bf16.mxu0 0
      %2388 = vmatpush1.bf16.msra.mxu0 0
      %2389 = vmatprep.subr.bf16.mxu0 0
      %2390 = vmatpush1.bf16.msra.mxu0 0
      %2391 = vmatprep.subr.bf16.mxu0 0
      %2392 = vmatpush1.bf16.msra.mxu0 0
      %2393 = vmatprep.subr.bf16.mxu0 0
      %2394 = vmatpush1.bf16.msra.mxu0 0
      %2395 = vmatprep.subr.bf16.mxu0 0
      %2396 = vmatpush1.bf16.msra.mxu0 0
      %2397 = vmatprep.mubr.bf16.mxu0 0
      %2398 = vmatmul.mubr.bf16.gmra.mrb[0].mxu0 %v2307
      %v2399 = vpop.f32.mrb[0].mxu0
      %v2400 = vadd.f32 %v2347, %v2399
      %v2401 = vpop.f32.mrb[0].mxu0
      %v2402 = vadd.f32 %v2349, %v2401
      %v2403 = vpop.f32.mrb[0].mxu0
      %v2404 = vadd.f32 %v2351, %v2403
      %v2405 = vpop.f32.mrb[0].mxu0
      %v2406 = vadd.f32 %v2353, %v2405
      %2407 = vmatprep.mubr.bf16.mxu0 0
      %2408 = vmatmul.mubr.bf16.gmra.mrb[0].mxu0 %v2310
      %v2409 = vpop.f32.mrb[0].mxu0
      %v2410 = vadd.f32 %v2357, %v2409
      %v2411 = vpop.f32.mrb[0].mxu0
      %v2412 = vadd.f32 %v2359, %v2411
      %v2413 = vpop.f32.mrb[0].mxu0
      %v2414 = vadd.f32 %v2361, %v2413
      %v2415 = vpop.f32.mrb[0].mxu0
      %v2416 = vadd.f32 %v2363, %v2415
      %2417 = vdwg.mxu0
      %2418 = vmatprep.subr.bf16.mxu0 %v2165
      %2419 = vmatpush1.bf16.msra.mxu0 %v2164
      %2420 = vmatprep.subr.bf16.mxu0 %v2170
      %2421 = vmatpush1.bf16.msra.mxu0 %v2169
      %2422 = vmatprep.subr.bf16.mxu0 %v2175
      %2423 = vmatpush1.bf16.msra.mxu0 %v2174
      %2424 = vmatprep.subr.bf16.mxu0 %v2180
      %2425 = vmatpush1.bf16.msra.mxu0 %v2179
      %2426 = vmatprep.subr.bf16.mxu0 %v2185
      %2427 = vmatpush1.bf16.msra.mxu0 %v2184
      %2428 = vmatprep.subr.bf16.mxu0 %v2190
      %2429 = vmatpush1.bf16.msra.mxu0 %v2189
      %2430 = vmatprep.subr.bf16.mxu0 %v2195
      %2431 = vmatpush1.bf16.msra.mxu0 %v2194
      %2432 = vmatprep.subr.bf16.mxu0 %v2200
      %2433 = vmatpush1.bf16.msra.mxu0 %v2199
      %2434 = vmatprep.subr.bf16.mxu0 %v2205
      %2435 = vmatpush1.bf16.msra.mxu0 %v2204
      %2436 = vmatprep.subr.bf16.mxu0 %v2210
      %2437 = vmatpush1.bf16.msra.mxu0 %v2209
      %2438 = vmatprep.subr.bf16.mxu0 %v2215
      %2439 = vmatpush1.bf16.msra.mxu0 %v2214
      %2440 = vmatprep.subr.bf16.mxu0 %v2220
      %2441 = vmatpush1.bf16.msra.mxu0 %v2219
      %2442 = vmatprep.subr.bf16.mxu0 %v2225
      %2443 = vmatpush1.bf16.msra.mxu0 %v2224
      %2444 = vmatprep.subr.bf16.mxu0 %v2230
      %2445 = vmatpush1.bf16.msra.mxu0 %v2229
      %2446 = vmatprep.subr.bf16.mxu0 %v2235
      %2447 = vmatpush1.bf16.msra.mxu0 %v2234
      %2448 = vmatprep.subr.bf16.mxu0 %v2240
      %2449 = vmatpush1.bf16.msra.mxu0 %v2239
      %2450 = vmatprep.mubr.bf16.mxu0 %v2297
      %2451 = vmatmul.mubr.bf16.gmra.mrb[0].mxu0 %v2296
      %v2452 = vpop.f32.mrb[0].mxu0
      %v2453 = vadd.f32 %v2259, %v2452
      %v2454 = vpop.f32.mrb[0].mxu0
      %v2455 = vadd.f32 %v2259, %v2454
      %v2456 = vpop.f32.mrb[0].mxu0
      %v2457 = vadd.f32 %v2264, %v2456
      %v2458 = vpop.f32.mrb[0].mxu0
      %v2459 = vadd.f32 %v2264, %v2458
      %2460 = vmatprep.mubr.bf16.mxu0 %v2300
      %2461 = vmatmul.mubr.bf16.gmra.mrb[0].mxu0 %v2299
      %v2462 = vpop.f32.mrb[0].mxu0
      %v2463 = vadd.f32 %v2269, %v2462
      %v2464 = vpop.f32.mrb[0].mxu0
      %v2465 = vadd.f32 %v2269, %v2464
      %v2466 = vpop.f32.mrb[0].mxu0
      %v2467 = vadd.f32 %v2274, %v2466
      %v2468 = vpop.f32.mrb[0].mxu0
      %v2469 = vadd.f32 %v2274, %v2468
      %2470 = vdwg.mxu0
      %2471 = vmatprep.subr.bf16.mxu0 %v2245
      %2472 = vmatpush1.bf16.msra.mxu0 %v2244
      %2473 = vmatprep.subr.bf16.mxu0 %v2250
      %2474 = vmatpush1.bf16.msra.mxu0 %v2249
      %2475 = vmatprep.subr.bf16.mxu0 0
      %2476 = vmatpush1.bf16.msra.mxu0 0
      %2477 = vmatprep.subr.bf16.mxu0 0
      %2478 = vmatpush1.bf16.msra.mxu0 0
      %2479 = vmatprep.subr.bf16.mxu0 0
      %2480 = vmatpush1.bf16.msra.mxu0 0
      %2481 = vmatprep.subr.bf16.mxu0 0
      %2482 = vmatpush1.bf16.msra.mxu0 0
      %2483 = vmatprep.subr.bf16.mxu0 0
      %2484 = vmatpush1.bf16.msra.mxu0 0
      %2485 = vmatprep.subr.bf16.mxu0 0
      %2486 = vmatpush1.bf16.msra.mxu0 0
      %2487 = vmatprep.subr.bf16.mxu0 0
      %2488 = vmatpush1.bf16.msra.mxu0 0
      %2489 = vmatprep.subr.bf16.mxu0 0
      %2490 = vmatpush1.bf16.msra.mxu0 0
      %2491 = vmatprep.subr.bf16.mxu0 0
      %2492 = vmatpush1.bf16.msra.mxu0 0
      %2493 = vmatprep.subr.bf16.mxu0 0
      %2494 = vmatpush1.bf16.msra.mxu0 0
      %2495 = vmatprep.subr.bf16.mxu0 0
      %2496 = vmatpush1.bf16.msra.mxu0 0
      %2497 = vmatprep.subr.bf16.mxu0 0
      %2498 = vmatpush1.bf16.msra.mxu0 0
      %2499 = vmatprep.subr.bf16.mxu0 0
      %2500 = vmatpush1.bf16.msra.mxu0 0
      %2501 = vmatprep.subr.bf16.mxu0 0
      %2502 = vmatpush1.bf16.msra.mxu0 0
      %2503 = vmatprep.mubr.bf16.mxu0 0
      %2504 = vmatmul.mubr.bf16.gmra.mrb[0].mxu0 %v2307
      %v2505 = vpop.f32.mrb[0].mxu0
      %v2506 = vadd.f32 %v2453, %v2505
      %v2507 = vpop.f32.mrb[0].mxu0
      %v2508 = vadd.f32 %v2455, %v2507
      %v2509 = vpop.f32.mrb[0].mxu0
      %v2510 = vadd.f32 %v2457, %v2509
      %v2511 = vpop.f32.mrb[0].mxu0
      %v2512 = vadd.f32 %v2459, %v2511
      %2513 = vmatprep.mubr.bf16.mxu0 0
      %2514 = vmatmul.mubr.bf16.gmra.mrb[0].mxu0 %v2310
      %v2515 = vpop.f32.mrb[0].mxu0
      %v2516 = vadd.f32 %v2463, %v2515
      %v2517 = vpop.f32.mrb[0].mxu0
      %v2518 = vadd.f32 %v2465, %v2517
      %v2519 = vpop.f32.mrb[0].mxu0
      %v2520 = vadd.f32 %v2467, %v2519
      %v2521 = vpop.f32.mrb[0].mxu0
      %v2522 = vadd.f32 %v2469, %v2521
      %2523 = vdwg.mxu0
      %2524 = vmatprep.subr.bf16.mxu0 0
      %2525 = vmatpush1.bf16.msra.mxu0 %v2166
      %2526 = vmatprep.subr.bf16.mxu0 0
      %2527 = vmatpush1.bf16.msra.mxu0 %v2171
      %2528 = vmatprep.subr.bf16.mxu0 0
      %2529 = vmatpush1.bf16.msra.mxu0 %v2176
      %2530 = vmatprep.subr.bf16.mxu0 0
      %2531 = vmatpush1.bf16.msra.mxu0 %v2181
      %2532 = vmatprep.subr.bf16.mxu0 0
      %2533 = vmatpush1.bf16.msra.mxu0 %v2186
      %2534 = vmatprep.subr.bf16.mxu0 0
      %2535 = vmatpush1.bf16.msra.mxu0 %v2191
      %2536 = vmatprep.subr.bf16.mxu0 0
      %2537 = vmatpush1.bf16.msra.mxu0 %v2196
      %2538 = vmatprep.subr.bf16.mxu0 0
      %2539 = vmatpush1.bf16.msra.mxu0 %v2201
      %2540 = vmatprep.subr.bf16.mxu0 0
      %2541 = vmatpush1.bf16.msra.mxu0 %v2206
      %2542 = vmatprep.subr.bf16.mxu0 0
      %2543 = vmatpush1.bf16.msra.mxu0 %v2211
      %2544 = vmatprep.subr.bf16.mxu0 0
      %2545 = vmatpush1.bf16.msra.mxu0 %v2216
      %2546 = vmatprep.subr.bf16.mxu0 0
      %2547 = vmatpush1.bf16.msra.mxu0 %v2221
      %2548 = vmatprep.subr.bf16.mxu0 0
      %2549 = vmatpush1.bf16.msra.mxu0 %v2226
      %2550 = vmatprep.subr.bf16.mxu0 0
      %2551 = vmatpush1.bf16.msra.mxu0 %v2231
      %2552 = vmatprep.subr.bf16.mxu0 0
      %2553 = vmatpush1.bf16.msra.mxu0 %v2236
      %2554 = vmatprep.subr.bf16.mxu0 0
      %2555 = vmatpush1.bf16.msra.mxu0 %v2241
      %2556 = vmatprep.mubr.bf16.mxu0 %v2297
      %2557 = vmatmul.mubr.bf16.gmra.mrb[0].mxu0 %v2296
      %v2558 = vpop.f32.mrb[0].mxu0
      %v2559 = vadd.f32 %v2259, %v2558
      %v2560 = vpop.f32.mrb[0].mxu0
      %v2561 = vpop.f32.mrb[0].mxu0
      %v2562 = vadd.f32 %v2264, %v2561
      %v2563 = vpop.f32.mrb[0].mxu0
      %2564 = vmatprep.mubr.bf16.mxu0 %v2300
      %2565 = vmatmul.mubr.bf16.gmra.mrb[0].mxu0 %v2299
      %v2566 = vpop.f32.mrb[0].mxu0
      %v2567 = vadd.f32 %v2269, %v2566
      %v2568 = vpop.f32.mrb[0].mxu0
      %v2569 = vpop.f32.mrb[0].mxu0
      %v2570 = vadd.f32 %v2274, %v2569
      %v2571 = vpop.f32.mrb[0].mxu0
      %2572 = vdwg.mxu0
      %2573 = vmatprep.subr.bf16.mxu0 0
      %2574 = vmatpush1.bf16.msra.mxu0 %v2246
      %2575 = vmatprep.subr.bf16.mxu0 0
      %2576 = vmatpush1.bf16.msra.mxu0 %v2251
      %2577 = vmatprep.subr.bf16.mxu0 0
      %2578 = vmatpush1.bf16.msra.mxu0 0
      %2579 = vmatprep.subr.bf16.mxu0 0
      %2580 = vmatpush1.bf16.msra.mxu0 0
      %2581 = vmatprep.subr.bf16.mxu0 0
      %2582 = vmatpush1.bf16.msra.mxu0 0
      %2583 = vmatprep.subr.bf16.mxu0 0
      %2584 = vmatpush1.bf16.msra.mxu0 0
      %2585 = vmatprep.subr.bf16.mxu0 0
      %2586 = vmatpush1.bf16.msra.mxu0 0
      %2587 = vmatprep.subr.bf16.mxu0 0
      %2588 = vmatpush1.bf16.msra.mxu0 0
      %2589 = vmatprep.subr.bf16.mxu0 0
      %2590 = vmatpush1.bf16.msra.mxu0 0
      %2591 = vmatprep.subr.bf16.mxu0 0
      %2592 = vmatpush1.bf16.msra.mxu0 0
      %2593 = vmatprep.subr.bf16.mxu0 0
      %2594 = vmatpush1.bf16.msra.mxu0 0
      %2595 = vmatprep.subr.bf16.mxu0 0
      %2596 = vmatpush1.bf16.msra.mxu0 0
      %2597 = vmatprep.subr.bf16.mxu0 0
      %2598 = vmatpush1.bf16.msra.mxu0 0
      %2599 = vmatprep.subr.bf16.mxu0 0
      %2600 = vmatpush1.bf16.msra.mxu0 0
      %2601 = vmatprep.subr.bf16.mxu0 0
      %2602 = vmatpush1.bf16.msra.mxu0 0
      %2603 = vmatprep.subr.bf16.mxu0 0
      %2604 = vmatpush1.bf16.msra.mxu0 0
      %2605 = vmatprep.mubr.bf16.mxu0 0
      %2606 = vmatmul.mubr.bf16.gmra.mrb[0].mxu0 %v2307
      %v2607 = vpop.f32.mrb[0].mxu0
      %v2608 = vadd.f32 %v2559, %v2607
      %v2609 = vpop.f32.mrb[0].mxu0
      %v2610 = vpop.f32.mrb[0].mxu0
      %v2611 = vadd.f32 %v2562, %v2610
      %v2612 = vpop.f32.mrb[0].mxu0
      %2613 = vmatprep.mubr.bf16.mxu0 0
      %2614 = vmatmul.mubr.bf16.gmra.mrb[0].mxu0 %v2310
      %v2615 = vpop.f32.mrb[0].mxu0
      %v2616 = vadd.f32 %v2567, %v2615
      %v2617 = vpop.f32.mrb[0].mxu0
      %v2618 = vpop.f32.mrb[0].mxu0
      %v2619 = vadd.f32 %v2570, %v2618
      %v2620 = vpop.f32.mrb[0].mxu0
      %2621 = vdwg.mxu0
      %v2622 = vadd.f32 %v262, %v2400
      %v2623 = vadd.f32 %v263, %v2402
      %v2624 = vadd.f32 %v264, %v2506
      %v2625 = vadd.f32 %v265, %v2508
      %v2626 = vadd.f32 %v266, %v2608
      %v2627 = vadd.f32 %v267, %v2404
      %v2628 = vadd.f32 %v268, %v2406
      %v2629 = vadd.f32 %v269, %v2510
      %v2630 = vadd.f32 %v270, %v2512
      %v2631 = vadd.f32 %v271, %v2611
      %v2632 = vadd.f32 %v272, %v2410
      %v2633 = vadd.f32 %v273, %v2412
      %v2634 = vadd.f32 %v274, %v2516
      %v2635 = vadd.f32 %v275, %v2518
      %v2636 = vadd.f32 %v276, %v2616
      %v2637 = vadd.f32 %v277, %v2414
      %v2638 = vadd.f32 %v278, %v2416
      %v2639 = vadd.f32 %v279, %v2520
      %v2640 = vadd.f32 %v280, %v2522
      %v2641 = vadd.f32 %v281, %v2619
      %2642 = vst [vmem:[%s251] sm:$0xff] %v2622
      %2643 = vst [vmem:[%s251 + $0x8] sm:$0xff] %v2623
      %2644 = vst [vmem:[%s251 + $0x10] sm:$0xff] %v2624
      %2645 = vst [vmem:[%s251 + $0x18] sm:$0xff] %v2625
      %2646 = vst.msk [vmem:[%s251 + $0x20] sm:$0xff] %vm367, %v2626
      %2647 = vst [vmem:[%s251 + $0x28] sm:$0xff] %v2627
      %2648 = vst [vmem:[%s251 + $0x30] sm:$0xff] %v2628
      %2649 = vst [vmem:[%s251 + $0x38] sm:$0xff] %v2629
      %2650 = vst [vmem:[%s251 + $0x40] sm:$0xff] %v2630
      %2651 = vst.msk [vmem:[%s251 + $0x48] sm:$0xff] %vm367, %v2631
      %2652 = vst [vmem:[%s251 + $0x50] sm:$0xff] %v2632
      %2653 = vst [vmem:[%s251 + $0x58] sm:$0xff] %v2633
      %2654 = vst [vmem:[%s251 + $0x60] sm:$0xff] %v2634
      %2655 = vst [vmem:[%s251 + $0x68] sm:$0xff] %v2635
      %2656 = vst.msk [vmem:[%s251 + $0x70] sm:$0xff] %vm367, %v2636
      %2657 = vst [vmem:[%s251 + $0x78] sm:$0xff] %v2637
      %2658 = vst [vmem:[%s251 + $0x80] sm:$0xff] %v2638
      %2659 = vst [vmem:[%s251 + $0x88] sm:$0xff] %v2639
      %2660 = vst [vmem:[%s251 + $0x90] sm:$0xff] %v2640
      %2661 = vst.msk [vmem:[%s251 + $0x98] sm:$0xff] %vm367, %v2641
      %p2662 = scmp.lt.s32.totalorder %s17, 1
      %s2663 = scalar_select %p2662, %s17, 1
      %s2664 = smul.addr %s2663, 20
      %s2665 = smul.addr %s2664, 8
      %s2666 = scalar_lea.vmem %s6, %s2665
      // Predicated region
      $region45: #{residual_block_nobn.1} parent=43 // pred_check
        %p2667 = pneg %p166
      $region46: #{residual_block_nobn.1} parent=43 // pred_check_branch
        %2669 = sbr.rel (%p2667) target = $region48
      $region47: #{residual_block_nobn.1} parent=43 // pred_region
        _
      $region48: #{residual_block_nobn.1} parent=43 // pred_fallthru
        _
    $region44: #{residual_block_nobn.1} parent=5 // pred_fallthru
      _
    %p2670 = scmp.le.s32.totalorder 2, %s12
    // Predicated region
    $region49: #{residual_block_nobn.1} parent=5 // pred_check
      %p2671 = pneg %p2670
    $region50: #{residual_block_nobn.1} parent=5 // pred_check_branch
      %2673 = sbr.rel (%p2671) target = $region52
    $region51: #{residual_block_nobn.1} parent=5 // pred_region
      %s2674 = ssub.s32 %s12, 2
      // Predicated region
      $region53: #{residual_block_nobn.1} parent=51 // pred_check
        %p2675 = pneg %p172
      $region54: #{residual_block_nobn.1} parent=51 // pred_check_branch
        %2677 = sbr.rel (%p2675) target = $region56
      $region55: #{residual_block_nobn.1} parent=51 // pred_region
        %p2678 = scmp.lt.s32.totalorder %s18, 1
        %s2679 = scalar_select %p2678, %s18, 1
        %s2680 = smul.addr %s2679, 20
        %s2681 = smul.addr %s2680, 8
        %s2682 = scalar_lea.vmem %s6, %s2681
      $region56: #{residual_block_nobn.1} parent=51 // pred_fallthru
        _
    $region52: #{residual_block_nobn.1} parent=5 // pred_fallthru
      _
  $region6: #{residual_block_nobn.1} parent=0 // loop_footer
    %s16 = sadd.s32 1, %s12
  $region7: #{residual_block_nobn.1} parent=0 // loop_footer_branch
    %11 = sbr.rel target = $region3
  $region8: #{residual_block_nobn.1} parent=0 // loop_exit
    _

</llo_original>
